<compile_context>
chip_gen: v7x
topology: tpu7x:2x2x1
jax: 0.10.0
libtpu: 0.0.40
codegen_flags: <defaults>
</compile_context>

<pallas_src>
import jax
import jax.numpy as jnp
import numpy as np
from jax import lax
from jax.experimental import pallas as pl
from jax.experimental.pallas import tpu as pltpu


def _padded_bytes(shape, dtype):
    """VMEM footprint of a >=2-D block after (sublane, lane) padding."""
    it = jnp.dtype(dtype).itemsize
    sub = 8 * (4 // it)                     # 8 rows/tile for f32, 16 for bf16
    rows, lanes = shape[-2], shape[-1]
    lead = int(np.prod(shape[:-2])) if len(shape) > 2 else 1
    rows_p = -(-rows // sub) * sub
    lanes_p = -(-lanes // 128) * 128
    return lead * rows_p * lanes_p * it


def _make_kernel(Bt, L, C_in, C_out, K, stride, pool, nc_pad):
    L1 = (L - K) // stride + 1
    L2 = (L1 - K) // stride + 1
    Lp = L2 // pool
    s2 = stride * stride
    q = pool * s2                            # slab-row step between pooled outputs
    M = Bt * L                               # rows of the flattened input slab
    Mp = M - (K - 1) * stride                # rows holding conv2 outputs
    Mz = Mp - (pool - 1) * s2                # rows holding pooled outputs

    # Static safety checks: valid rows never read across a sample boundary and
    # the strided FC gather stays inside z_scr (OOB VMEM reads are unchecked).
    assert L1 >= K and L2 >= pool and Lp >= 1
    assert (L1 - 1) * stride + (K - 1) <= L - 1
    assert (L2 - 1) * stride + (K - 1) <= L1 - 1
    assert (Lp * pool - 1) * s2 + (K - 1) * stride < L
    assert (Bt - 1) * L + (Lp - 1) * q < Mz, "pooled-row gather would read past Mz"

    def kernel(x_ref, w1_ref, b1_ref, w2_ref, b2_ref, wf_ref, bf_ref,
               out_ref, z_scr):
        # ---- conv1 (+bias, relu): im2col done in the wrapper -> ONE bf16 matmul.
        # Slab row r = b*L + i; valid conv1 outputs live at r = b*L + l1*stride.
        y = jnp.dot(x_ref[...], w1_ref[...], preferred_element_type=jnp.float32)
        y = jnp.maximum(y + b1_ref[...], 0.0)                       # (M, C_out) f32

        # ---- conv2 (+bias, relu): lane-concatenate the K shifted tap views and
        # contract against the stacked (K*C_out, C_out) weight in ONE matmul.
        y_cat = jnp.concatenate(
            [y[k * stride:k * stride + Mp, :] for k in range(K)],
            axis=-1).astype(jnp.bfloat16)                           # (Mp, K*C_out)
        z = jnp.dot(y_cat, w2_ref[...], preferred_element_type=jnp.float32)
        z = jnp.maximum(z + b2_ref[...], 0.0)                       # (Mp, C_out) f32

        # ---- maxpool1d as elementwise max of shifted slabs (VPU); pooled value
        # for (b, t) ends up at slab row b*L + t*q.
        zm = z[0:Mz, :]
        for p in range(1, pool):
            zm = jnp.maximum(zm, z[p * s2:p * s2 + Mz, :])
        z_scr[...] = zm                                             # (Mz, C_out)

        # ---- flatten + linear: accumulate directly on the MXU (no flat_scr,
        # no narrow masked stores).  Each tap is a (Bt, C_out) strided gather.
        # TODO(synk): nn.Dropout(p=0.5) is identity at inference time.
        acc = jnp.zeros((Bt, nc_pad), jnp.float32)
        for t in range(Lp):
            zt = z_scr[pl.ds(t * q, Bt, stride=L), :]               # (Bt, C_out)
            acc += jnp.dot(zt.astype(jnp.bfloat16), wf_ref[t],
                           preferred_element_type=jnp.float32)
        logits = acc + bf_ref[...]        # padded classes carry bias -1e30 (f32)

        # ---- softmax over classes (padded lanes -> exp == 0); reciprocal on EUP.
        m = jnp.max(logits, axis=-1, keepdims=True)
        e = jnp.exp(logits - m)
        out_ref[...] = e * pl.reciprocal(
            jnp.sum(e, axis=-1, keepdims=True), approx=True)

    scratch = [pltpu.VMEM((Mz, C_out), jnp.float32)]
    return kernel, scratch, Lp


def cnn_one_deep_block(x_ncl, params, *, kernel_size, stride, pool_size, num_classes):
    """x_ncl: (B, C_in, L) float32, PyTorch NCL layout. params in PyTorch conventions."""
    w1, b1, w2, b2, wf, bf = params
    B, C_in, L = x_ncl.shape
    C_out = w1.shape[0]
    K = kernel_size
    L1 = (L - K) // stride + 1
    L2 = (L1 - K) // stride + 1
    Lp = L2 // pool_size
    nc_pad = ((num_classes + 127) // 128) * 128

    # ---- batch tiling: size tiles by the PADDED VMEM footprint (lanes -> 128,
    # sublanes -> 8/16, x2 double buffering, scratch + live intermediates).
    def step_bytes(Bt):
        M = Bt * L
        fp = 0
        fp += 2 * _padded_bytes((M, K * C_in), jnp.bfloat16)        # x block (dbuf)
        fp += 2 * _padded_bytes((Bt, nc_pad), jnp.float32)          # out block (dbuf)
        fp += _padded_bytes((M, C_out), jnp.float32)                # z_scr
        fp += 3 * _padded_bytes((M, C_out), jnp.float32)            # live y / y_cat / z
        fp += 2 * (_padded_bytes((K * C_in, C_out), jnp.bfloat16)
                   + _padded_bytes((K * C_out, C_out), jnp.bfloat16)
                   + _padded_bytes((Lp, C_out, nc_pad), jnp.bfloat16)
                   + 2 * _padded_bytes((1, nc_pad), jnp.float32))
        return fp

    def can_split(n):
        return B % (2 * n) == 0 and (B // (2 * n)) % 8 == 0

    budget = 24 << 20
    n_tiles = 1
    while step_bytes(B // n_tiles) > budget and can_split(n_tiles):
        n_tiles *= 2
    # Prefer >= 2 "parallel" tiles when the batch allows it: feeds both
    # TensorCores on v7x and restores DMA/compute overlap on every generation.
    if n_tiles == 1 and can_split(1):
        n_tiles = 2
    Bt = B // n_tiles

    # vmem limit: padded footprint with headroom, capped per generation
    # (v7x has only 64 MiB physical VMEM; v5e/v6e have 128 MiB).
    try:
        kind = jax.devices()[0].device_kind.lower()
    except Exception:
        kind = ""
    cap = (100 << 20) if ("v5" in kind or "v6" in kind) else (56 << 20)
    vmem_limit = int(min(cap, max(2 * step_bytes(Bt), 16 << 20)))

    kernel, scratch, _ = _make_kernel(Bt, L, C_in, C_out, K, stride, pool_size, nc_pad)

    # --- plain-JAX glue: layout rearrangement only ---
    x2d = jnp.transpose(x_ncl, (0, 2, 1)).reshape(B * L, C_in).astype(jnp.float32)
    # im2col for conv1: row r holds x rows r .. r+K-1 stacked on lanes.
    taps = [x2d] + [jnp.pad(x2d[k:], ((0, k), (0, 0))) for k in range(1, K)]
    x_im2col = jnp.concatenate(taps, axis=-1).astype(jnp.bfloat16)   # (B*L, K*C_in)

    w1_k = jnp.transpose(w1, (2, 1, 0)).reshape(K * C_in, C_out).astype(jnp.bfloat16)
    w2_k = jnp.transpose(w2, (2, 1, 0)).reshape(K * C_out, C_out).astype(jnp.bfloat16)
    b1_k = b1.reshape(1, C_out).astype(jnp.float32)
    b2_k = b2.reshape(1, C_out).astype(jnp.float32)
    # fc weight: PyTorch flatten index is c*Lp + t; kernel uses per-tap (t, c) blocks.
    wf_k = jnp.transpose(wf.reshape(num_classes, C_out, Lp), (2, 1, 0))   # (Lp, C_out, nc)
    wf_k = jnp.pad(wf_k, ((0, 0), (0, 0), (0, nc_pad - num_classes))).astype(jnp.bfloat16)
    bf_k = jnp.pad(bf.reshape(1, num_classes).astype(jnp.float32),
                   ((0, 0), (0, nc_pad - num_classes)), constant_values=-1e30)

    out = pl.pallas_call(
        kernel,
        out_shape=jax.ShapeDtypeStruct((B, nc_pad), jnp.float32),
        grid=(n_tiles,),
        in_specs=[
            pl.BlockSpec((Bt * L, K * C_in), lambda i: (i, 0)),
            pl.BlockSpec((K * C_in, C_out), lambda i: (0, 0)),
            pl.BlockSpec((1, C_out), lambda i: (0, 0)),
            pl.BlockSpec((K * C_out, C_out), lambda i: (0, 0)),
            pl.BlockSpec((1, C_out), lambda i: (0, 0)),
            pl.BlockSpec((Lp, C_out, nc_pad), lambda i: (0, 0, 0)),
            pl.BlockSpec((1, nc_pad), lambda i: (0, 0)),
        ],
        out_specs=pl.BlockSpec((Bt, nc_pad), lambda i: (i, 0)),
        scratch_shapes=scratch,
        compiler_params=pltpu.CompilerParams(
            dimension_semantics=("parallel",),       # batch tiles are independent
            vmem_limit_bytes=vmem_limit),
    )(x_im2col, w1_k, b1_k, w2_k, b2_k, wf_k, bf_k)

    return out[:, :num_classes]


def ref_forward(x, w1, b1, w2, b2, wf, bf, *, stride, pool, num_classes):
    """Pure-JAX f32 reference following PyTorch NCL semantics exactly."""
    dn = ("NCH", "OIH", "NCH")
    y = lax.conv_general_dilated(x, w1, (stride,), "VALID", dimension_numbers=dn)
    y = jax.nn.relu(y + b1[None, :, None])
    y = lax.conv_general_dilated(y, w2, (stride,), "VALID", dimension_numbers=dn)
    y = jax.nn.relu(y + b2[None, :, None])
    B, C, L2 = y.shape
    Lp = L2 // pool
    y = y[:, :, :Lp * pool].reshape(B, C, Lp, pool).max(axis=-1)    # MaxPool1d
    flat = y.reshape(B, -1)                                         # Flatten (dropout=identity)
    logits = flat @ wf.T + bf
    return jax.nn.softmax(logits, axis=1)


if __name__ == "__main__":
    # small, module-consistent config
    B, C_in, C_out = 2, 4, 8
    K, stride, pool = 3, 1, 2
    num_classes = 10
    L = 32
    L1 = (L - K) // stride + 1           # 30
    L2 = (L1 - K) // stride + 1          # 28
    Lp = L2 // pool                      # 14
    feat = C_out * Lp                    # LazyLinear in_features = 112

    key = jax.random.PRNGKey(0)
    k = jax.random.split(key, 7)
    x = jax.random.normal(k[0], (B, C_in, L), jnp.float32)
    w1 = 0.1 * jax.random.normal(k[1], (C_out, C_in, K), jnp.float32)
    b1 = 0.1 * jax.random.normal(k[2], (C_out,), jnp.float32)
    w2 = 0.1 * jax.random.normal(k[3], (C_out, C_out, K), jnp.float32)
    b2 = 0.1 * jax.random.normal(k[4], (C_out,), jnp.float32)
    wf = 0.1 * jax.random.normal(k[5], (num_classes, feat), jnp.float32)
    bf = 0.1 * jax.random.normal(k[6], (num_classes,), jnp.float32)

    out = cnn_one_deep_block(
        x, (w1, b1, w2, b2, wf, bf),
        kernel_size=K, stride=stride, pool_size=pool, num_classes=num_classes)
    out = jax.block_until_ready(out)

    ref = ref_forward(x, w1, b1, w2, b2, wf, bf,
                      stride=stride, pool=pool, num_classes=num_classes)
    ref = jax.block_until_ready(ref)

    assert out.shape == (B, num_classes)
    # Kernel uses bf16 MXU operands (f32 accumulation), so allow bf16-level
    # tolerance against the pure-f32 reference.
    assert np.allclose(np.asarray(out), np.asarray(ref), rtol=1e-2, atol=3e-3), (
        f"mismatch: max abs err {np.max(np.abs(np.asarray(out) - np.asarray(ref)))}")
    print("KERNEL_OK")
</pallas_src>

<mosaic_0001>
module attributes {stable_mosaic.version = 11 : i64} {
  func.func @kernel(%arg0: i32, %arg1: memref<64x12xbf16, #tpu.memory_space<vmem>>, %arg2: memref<12x8xbf16, #tpu.memory_space<vmem>>, %arg3: memref<1x8xf32, #tpu.memory_space<vmem>>, %arg4: memref<24x8xbf16, #tpu.memory_space<vmem>>, %arg5: memref<1x8xf32, #tpu.memory_space<vmem>>, %arg6: memref<14x8x128xbf16, #tpu.memory_space<vmem>>, %arg7: memref<1x128xf32, #tpu.memory_space<vmem>>, %arg8: memref<2x128xf32, #tpu.memory_space<vmem>>, %arg9: memref<61x8xf32, #tpu.memory_space<vmem>>) attributes {dimension_semantics = [#tpu.dimension_semantics<parallel>], iteration_bounds = array<i64: 1>, scalar_prefetch = 0 : i64, scratch_operands = 1 : i64, tpu.core_type = #tpu.core_type<tc>, window_params = [{transform_indices = @transform_0, window_bounds = array<i64: 64, 12>}, {pipeline_mode = #tpu.pipeline_mode<synchronous>, transform_indices = @transform_1, window_bounds = array<i64: 12, 8>}, {pipeline_mode = #tpu.pipeline_mode<synchronous>, transform_indices = @transform_2, window_bounds = array<i64: 1, 8>}, {pipeline_mode = #tpu.pipeline_mode<synchronous>, transform_indices = @transform_3, window_bounds = array<i64: 24, 8>}, {pipeline_mode = #tpu.pipeline_mode<synchronous>, transform_indices = @transform_4, window_bounds = array<i64: 1, 8>}, {pipeline_mode = #tpu.pipeline_mode<synchronous>, transform_indices = @transform_5, window_bounds = array<i64: 14, 8, 128>}, {pipeline_mode = #tpu.pipeline_mode<synchronous>, transform_indices = @transform_6, window_bounds = array<i64: 1, 128>}, {transform_indices = @transform_7, window_bounds = array<i64: 2, 128>}]} {
    %c0 = arith.constant 0 : index
    %c0_0 = arith.constant 0 : index
    %0 = vector.load %arg1[%c0, %c0_0] : memref<64x12xbf16, #tpu.memory_space<vmem>>, vector<64x12xbf16>
    %c0_1 = arith.constant 0 : index
    %c0_2 = arith.constant 0 : index
    %1 = vector.load %arg2[%c0_1, %c0_2] : memref<12x8xbf16, #tpu.memory_space<vmem>>, vector<12x8xbf16>
    %cst = arith.constant dense<0.000000e+00> : vector<64x8xf32>
    %2 = tpu.matmul %0, %1, %cst {dimension_numbers = #tpu.dot_dimension_numbers<[1], [0], [0], [1], [0, 0, 1, 1], [], []>} : vector<64x12xbf16>, vector<12x8xbf16>, vector<64x8xf32> -> vector<64x8xf32>
    %c0_3 = arith.constant 0 : index
    %c0_4 = arith.constant 0 : index
    %3 = vector.load %arg3[%c0_3, %c0_4] : memref<1x8xf32, #tpu.memory_space<vmem>>, vector<1x8xf32>
    %4 = vector.broadcast %3 : vector<1x8xf32> to vector<64x8xf32>
    %5 = arith.addf %2, %4 : vector<64x8xf32>
    %cst_5 = arith.constant 0.000000e+00 : f32
    %6 = vector.broadcast %cst_5 : f32 to vector<64x8xf32>
    %7 = arith.maximumf %5, %6 : vector<64x8xf32>
    %8 = vector.extract_strided_slice %7 {offsets = [0, 0], sizes = [62, 8], strides = [1, 1]} : vector<64x8xf32> to vector<62x8xf32>
    %9 = vector.extract_strided_slice %7 {offsets = [1, 0], sizes = [62, 8], strides = [1, 1]} : vector<64x8xf32> to vector<62x8xf32>
    %10 = vector.extract_strided_slice %7 {offsets = [2, 0], sizes = [62, 8], strides = [1, 1]} : vector<64x8xf32> to vector<62x8xf32>
    %11 = tpu.concatenate %8, %9, %10 in 1 : vector<62x8xf32>, vector<62x8xf32>, vector<62x8xf32> -> vector<62x24xf32>
    %12 = arith.truncf %11 : vector<62x24xf32> to vector<62x24xbf16>
    %c0_6 = arith.constant 0 : index
    %c0_7 = arith.constant 0 : index
    %13 = vector.load %arg4[%c0_6, %c0_7] : memref<24x8xbf16, #tpu.memory_space<vmem>>, vector<24x8xbf16>
    %cst_8 = arith.constant dense<0.000000e+00> : vector<62x8xf32>
    %14 = tpu.matmul %12, %13, %cst_8 {dimension_numbers = #tpu.dot_dimension_numbers<[1], [0], [0], [1], [0, 0, 1, 1], [], []>} : vector<62x24xbf16>, vector<24x8xbf16>, vector<62x8xf32> -> vector<62x8xf32>
    %c0_9 = arith.constant 0 : index
    %c0_10 = arith.constant 0 : index
    %15 = vector.load %arg5[%c0_9, %c0_10] : memref<1x8xf32, #tpu.memory_space<vmem>>, vector<1x8xf32>
    %16 = vector.broadcast %15 : vector<1x8xf32> to vector<62x8xf32>
    %17 = arith.addf %14, %16 : vector<62x8xf32>
    %cst_11 = arith.constant 0.000000e+00 : f32
    %18 = vector.broadcast %cst_11 : f32 to vector<62x8xf32>
    %19 = arith.maximumf %17, %18 : vector<62x8xf32>
    %20 = vector.extract_strided_slice %19 {offsets = [0, 0], sizes = [61, 8], strides = [1, 1]} : vector<62x8xf32> to vector<61x8xf32>
    %21 = vector.extract_strided_slice %19 {offsets = [1, 0], sizes = [61, 8], strides = [1, 1]} : vector<62x8xf32> to vector<61x8xf32>
    %22 = arith.maximumf %20, %21 : vector<61x8xf32>
    %c0_12 = arith.constant 0 : index
    %c0_13 = arith.constant 0 : index
    %23 = vector.load %arg9[%c0_12, %c0_13] : memref<61x8xf32, #tpu.memory_space<vmem>>, vector<61x8xf32>
    tpu.vector_store %arg9[%c0_12, %c0_13], %22 {strides = array<i32>} : memref<61x8xf32, #tpu.memory_space<vmem>>, vector<61x8xf32>,
    %cst_14 = arith.constant 0.000000e+00 : f32
    %24 = vector.broadcast %cst_14 : f32 to vector<2x128xf32>
    %c0_15 = arith.constant 0 : index
    %c0_16 = arith.constant 0 : index
    %25 = tpu.strided_load %arg9[%c0_15, %c0_16] {strides = array<i32: 32, 1>} : memref<61x8xf32, #tpu.memory_space<vmem>>, vector<2x8xf32>
    %26 = arith.truncf %25 : vector<2x8xf32> to vector<2x8xbf16>
    %c0_17 = arith.constant 0 : index
    %c0_18 = arith.constant 0 : index
    %c0_19 = arith.constant 0 : index
    %27 = vector.load %arg6[%c0_17, %c0_18, %c0_19] : memref<14x8x128xbf16, #tpu.memory_space<vmem>>, vector<1x8x128xbf16>
    %28 = vector.shape_cast %27 : vector<1x8x128xbf16> to vector<8x128xbf16>
    %cst_20 = arith.constant dense<0.000000e+00> : vector<2x128xf32>
    %29 = tpu.matmul %26, %28, %cst_20 {dimension_numbers = #tpu.dot_dimension_numbers<[1], [0], [0], [1], [0, 0, 1, 1], [], []>} : vector<2x8xbf16>, vector<8x128xbf16>, vector<2x128xf32> -> vector<2x128xf32>
    %30 = arith.addf %24, %29 : vector<2x128xf32>
    %c2 = arith.constant 2 : index
    %c0_21 = arith.constant 0 : index
    %31 = tpu.strided_load %arg9[%c2, %c0_21] {strides = array<i32: 32, 1>} : memref<61x8xf32, #tpu.memory_space<vmem>>, vector<2x8xf32>
    %32 = arith.truncf %31 : vector<2x8xf32> to vector<2x8xbf16>
    %c1 = arith.constant 1 : index
    %c0_22 = arith.constant 0 : index
    %c0_23 = arith.constant 0 : index
    %33 = vector.load %arg6[%c1, %c0_22, %c0_23] : memref<14x8x128xbf16, #tpu.memory_space<vmem>>, vector<1x8x128xbf16>
    %34 = vector.shape_cast %33 : vector<1x8x128xbf16> to vector<8x128xbf16>
    %cst_24 = arith.constant dense<0.000000e+00> : vector<2x128xf32>
    %35 = tpu.matmul %32, %34, %cst_24 {dimension_numbers = #tpu.dot_dimension_numbers<[1], [0], [0], [1], [0, 0, 1, 1], [], []>} : vector<2x8xbf16>, vector<8x128xbf16>, vector<2x128xf32> -> vector<2x128xf32>
    %36 = arith.addf %30, %35 : vector<2x128xf32>
    %c4 = arith.constant 4 : index
    %c0_25 = arith.constant 0 : index
    %37 = tpu.strided_load %arg9[%c4, %c0_25] {strides = array<i32: 32, 1>} : memref<61x8xf32, #tpu.memory_space<vmem>>, vector<2x8xf32>
    %38 = arith.truncf %37 : vector<2x8xf32> to vector<2x8xbf16>
    %c2_26 = arith.constant 2 : index
    %c0_27 = arith.constant 0 : index
    %c0_28 = arith.constant 0 : index
    %39 = vector.load %arg6[%c2_26, %c0_27, %c0_28] : memref<14x8x128xbf16, #tpu.memory_space<vmem>>, vector<1x8x128xbf16>
    %40 = vector.shape_cast %39 : vector<1x8x128xbf16> to vector<8x128xbf16>
    %cst_29 = arith.constant dense<0.000000e+00> : vector<2x128xf32>
    %41 = tpu.matmul %38, %40, %cst_29 {dimension_numbers = #tpu.dot_dimension_numbers<[1], [0], [0], [1], [0, 0, 1, 1], [], []>} : vector<2x8xbf16>, vector<8x128xbf16>, vector<2x128xf32> -> vector<2x128xf32>
    %42 = arith.addf %36, %41 : vector<2x128xf32>
    %c6 = arith.constant 6 : index
    %c0_30 = arith.constant 0 : index
    %43 = tpu.strided_load %arg9[%c6, %c0_30] {strides = array<i32: 32, 1>} : memref<61x8xf32, #tpu.memory_space<vmem>>, vector<2x8xf32>
    %44 = arith.truncf %43 : vector<2x8xf32> to vector<2x8xbf16>
    %c3 = arith.constant 3 : index
    %c0_31 = arith.constant 0 : index
    %c0_32 = arith.constant 0 : index
    %45 = vector.load %arg6[%c3, %c0_31, %c0_32] : memref<14x8x128xbf16, #tpu.memory_space<vmem>>, vector<1x8x128xbf16>
    %46 = vector.shape_cast %45 : vector<1x8x128xbf16> to vector<8x128xbf16>
    %cst_33 = arith.constant dense<0.000000e+00> : vector<2x128xf32>
    %47 = tpu.matmul %44, %46, %cst_33 {dimension_numbers = #tpu.dot_dimension_numbers<[1], [0], [0], [1], [0, 0, 1, 1], [], []>} : vector<2x8xbf16>, vector<8x128xbf16>, vector<2x128xf32> -> vector<2x128xf32>
    %48 = arith.addf %42, %47 : vector<2x128xf32>
    %c8 = arith.constant 8 : index
    %c0_34 = arith.constant 0 : index
    %49 = tpu.strided_load %arg9[%c8, %c0_34] {strides = array<i32: 32, 1>} : memref<61x8xf32, #tpu.memory_space<vmem>>, vector<2x8xf32>
    %50 = arith.truncf %49 : vector<2x8xf32> to vector<2x8xbf16>
    %c4_35 = arith.constant 4 : index
    %c0_36 = arith.constant 0 : index
    %c0_37 = arith.constant 0 : index
    %51 = vector.load %arg6[%c4_35, %c0_36, %c0_37] : memref<14x8x128xbf16, #tpu.memory_space<vmem>>, vector<1x8x128xbf16>
    %52 = vector.shape_cast %51 : vector<1x8x128xbf16> to vector<8x128xbf16>
    %cst_38 = arith.constant dense<0.000000e+00> : vector<2x128xf32>
    %53 = tpu.matmul %50, %52, %cst_38 {dimension_numbers = #tpu.dot_dimension_numbers<[1], [0], [0], [1], [0, 0, 1, 1], [], []>} : vector<2x8xbf16>, vector<8x128xbf16>, vector<2x128xf32> -> vector<2x128xf32>
    %54 = arith.addf %48, %53 : vector<2x128xf32>
    %c10 = arith.constant 10 : index
    %c0_39 = arith.constant 0 : index
    %55 = tpu.strided_load %arg9[%c10, %c0_39] {strides = array<i32: 32, 1>} : memref<61x8xf32, #tpu.memory_space<vmem>>, vector<2x8xf32>
    %56 = arith.truncf %55 : vector<2x8xf32> to vector<2x8xbf16>
    %c5 = arith.constant 5 : index
    %c0_40 = arith.constant 0 : index
    %c0_41 = arith.constant 0 : index
    %57 = vector.load %arg6[%c5, %c0_40, %c0_41] : memref<14x8x128xbf16, #tpu.memory_space<vmem>>, vector<1x8x128xbf16>
    %58 = vector.shape_cast %57 : vector<1x8x128xbf16> to vector<8x128xbf16>
    %cst_42 = arith.constant dense<0.000000e+00> : vector<2x128xf32>
    %59 = tpu.matmul %56, %58, %cst_42 {dimension_numbers = #tpu.dot_dimension_numbers<[1], [0], [0], [1], [0, 0, 1, 1], [], []>} : vector<2x8xbf16>, vector<8x128xbf16>, vector<2x128xf32> -> vector<2x128xf32>
    %60 = arith.addf %54, %59 : vector<2x128xf32>
    %c12 = arith.constant 12 : index
    %c0_43 = arith.constant 0 : index
    %61 = tpu.strided_load %arg9[%c12, %c0_43] {strides = array<i32: 32, 1>} : memref<61x8xf32, #tpu.memory_space<vmem>>, vector<2x8xf32>
    %62 = arith.truncf %61 : vector<2x8xf32> to vector<2x8xbf16>
    %c6_44 = arith.constant 6 : index
    %c0_45 = arith.constant 0 : index
    %c0_46 = arith.constant 0 : index
    %63 = vector.load %arg6[%c6_44, %c0_45, %c0_46] : memref<14x8x128xbf16, #tpu.memory_space<vmem>>, vector<1x8x128xbf16>
    %64 = vector.shape_cast %63 : vector<1x8x128xbf16> to vector<8x128xbf16>
    %cst_47 = arith.constant dense<0.000000e+00> : vector<2x128xf32>
    %65 = tpu.matmul %62, %64, %cst_47 {dimension_numbers = #tpu.dot_dimension_numbers<[1], [0], [0], [1], [0, 0, 1, 1], [], []>} : vector<2x8xbf16>, vector<8x128xbf16>, vector<2x128xf32> -> vector<2x128xf32>
    %66 = arith.addf %60, %65 : vector<2x128xf32>
    %c14 = arith.constant 14 : index
    %c0_48 = arith.constant 0 : index
    %67 = tpu.strided_load %arg9[%c14, %c0_48] {strides = array<i32: 32, 1>} : memref<61x8xf32, #tpu.memory_space<vmem>>, vector<2x8xf32>
    %68 = arith.truncf %67 : vector<2x8xf32> to vector<2x8xbf16>
    %c7 = arith.constant 7 : index
    %c0_49 = arith.constant 0 : index
    %c0_50 = arith.constant 0 : index
    %69 = vector.load %arg6[%c7, %c0_49, %c0_50] : memref<14x8x128xbf16, #tpu.memory_space<vmem>>, vector<1x8x128xbf16>
    %70 = vector.shape_cast %69 : vector<1x8x128xbf16> to vector<8x128xbf16>
    %cst_51 = arith.constant dense<0.000000e+00> : vector<2x128xf32>
    %71 = tpu.matmul %68, %70, %cst_51 {dimension_numbers = #tpu.dot_dimension_numbers<[1], [0], [0], [1], [0, 0, 1, 1], [], []>} : vector<2x8xbf16>, vector<8x128xbf16>, vector<2x128xf32> -> vector<2x128xf32>
    %72 = arith.addf %66, %71 : vector<2x128xf32>
    %c16 = arith.constant 16 : index
    %c0_52 = arith.constant 0 : index
    %73 = tpu.strided_load %arg9[%c16, %c0_52] {strides = array<i32: 32, 1>} : memref<61x8xf32, #tpu.memory_space<vmem>>, vector<2x8xf32>
    %74 = arith.truncf %73 : vector<2x8xf32> to vector<2x8xbf16>
    %c8_53 = arith.constant 8 : index
    %c0_54 = arith.constant 0 : index
    %c0_55 = arith.constant 0 : index
    %75 = vector.load %arg6[%c8_53, %c0_54, %c0_55] : memref<14x8x128xbf16, #tpu.memory_space<vmem>>, vector<1x8x128xbf16>
    %76 = vector.shape_cast %75 : vector<1x8x128xbf16> to vector<8x128xbf16>
    %cst_56 = arith.constant dense<0.000000e+00> : vector<2x128xf32>
    %77 = tpu.matmul %74, %76, %cst_56 {dimension_numbers = #tpu.dot_dimension_numbers<[1], [0], [0], [1], [0, 0, 1, 1], [], []>} : vector<2x8xbf16>, vector<8x128xbf16>, vector<2x128xf32> -> vector<2x128xf32>
    %78 = arith.addf %72, %77 : vector<2x128xf32>
    %c18 = arith.constant 18 : index
    %c0_57 = arith.constant 0 : index
    %79 = tpu.strided_load %arg9[%c18, %c0_57] {strides = array<i32: 32, 1>} : memref<61x8xf32, #tpu.memory_space<vmem>>, vector<2x8xf32>
    %80 = arith.truncf %79 : vector<2x8xf32> to vector<2x8xbf16>
    %c9 = arith.constant 9 : index
    %c0_58 = arith.constant 0 : index
    %c0_59 = arith.constant 0 : index
    %81 = vector.load %arg6[%c9, %c0_58, %c0_59] : memref<14x8x128xbf16, #tpu.memory_space<vmem>>, vector<1x8x128xbf16>
    %82 = vector.shape_cast %81 : vector<1x8x128xbf16> to vector<8x128xbf16>
    %cst_60 = arith.constant dense<0.000000e+00> : vector<2x128xf32>
    %83 = tpu.matmul %80, %82, %cst_60 {dimension_numbers = #tpu.dot_dimension_numbers<[1], [0], [0], [1], [0, 0, 1, 1], [], []>} : vector<2x8xbf16>, vector<8x128xbf16>, vector<2x128xf32> -> vector<2x128xf32>
    %84 = arith.addf %78, %83 : vector<2x128xf32>
    %c20 = arith.constant 20 : index
    %c0_61 = arith.constant 0 : index
    %85 = tpu.strided_load %arg9[%c20, %c0_61] {strides = array<i32: 32, 1>} : memref<61x8xf32, #tpu.memory_space<vmem>>, vector<2x8xf32>
    %86 = arith.truncf %85 : vector<2x8xf32> to vector<2x8xbf16>
    %c10_62 = arith.constant 10 : index
    %c0_63 = arith.constant 0 : index
    %c0_64 = arith.constant 0 : index
    %87 = vector.load %arg6[%c10_62, %c0_63, %c0_64] : memref<14x8x128xbf16, #tpu.memory_space<vmem>>, vector<1x8x128xbf16>
    %88 = vector.shape_cast %87 : vector<1x8x128xbf16> to vector<8x128xbf16>
    %cst_65 = arith.constant dense<0.000000e+00> : vector<2x128xf32>
    %89 = tpu.matmul %86, %88, %cst_65 {dimension_numbers = #tpu.dot_dimension_numbers<[1], [0], [0], [1], [0, 0, 1, 1], [], []>} : vector<2x8xbf16>, vector<8x128xbf16>, vector<2x128xf32> -> vector<2x128xf32>
    %90 = arith.addf %84, %89 : vector<2x128xf32>
    %c22 = arith.constant 22 : index
    %c0_66 = arith.constant 0 : index
    %91 = tpu.strided_load %arg9[%c22, %c0_66] {strides = array<i32: 32, 1>} : memref<61x8xf32, #tpu.memory_space<vmem>>, vector<2x8xf32>
    %92 = arith.truncf %91 : vector<2x8xf32> to vector<2x8xbf16>
    %c11 = arith.constant 11 : index
    %c0_67 = arith.constant 0 : index
    %c0_68 = arith.constant 0 : index
    %93 = vector.load %arg6[%c11, %c0_67, %c0_68] : memref<14x8x128xbf16, #tpu.memory_space<vmem>>, vector<1x8x128xbf16>
    %94 = vector.shape_cast %93 : vector<1x8x128xbf16> to vector<8x128xbf16>
    %cst_69 = arith.constant dense<0.000000e+00> : vector<2x128xf32>
    %95 = tpu.matmul %92, %94, %cst_69 {dimension_numbers = #tpu.dot_dimension_numbers<[1], [0], [0], [1], [0, 0, 1, 1], [], []>} : vector<2x8xbf16>, vector<8x128xbf16>, vector<2x128xf32> -> vector<2x128xf32>
    %96 = arith.addf %90, %95 : vector<2x128xf32>
    %c24 = arith.constant 24 : index
    %c0_70 = arith.constant 0 : index
    %97 = tpu.strided_load %arg9[%c24, %c0_70] {strides = array<i32: 32, 1>} : memref<61x8xf32, #tpu.memory_space<vmem>>, vector<2x8xf32>
    %98 = arith.truncf %97 : vector<2x8xf32> to vector<2x8xbf16>
    %c12_71 = arith.constant 12 : index
    %c0_72 = arith.constant 0 : index
    %c0_73 = arith.constant 0 : index
    %99 = vector.load %arg6[%c12_71, %c0_72, %c0_73] : memref<14x8x128xbf16, #tpu.memory_space<vmem>>, vector<1x8x128xbf16>
    %100 = vector.shape_cast %99 : vector<1x8x128xbf16> to vector<8x128xbf16>
    %cst_74 = arith.constant dense<0.000000e+00> : vector<2x128xf32>
    %101 = tpu.matmul %98, %100, %cst_74 {dimension_numbers = #tpu.dot_dimension_numbers<[1], [0], [0], [1], [0, 0, 1, 1], [], []>} : vector<2x8xbf16>, vector<8x128xbf16>, vector<2x128xf32> -> vector<2x128xf32>
    %102 = arith.addf %96, %101 : vector<2x128xf32>
    %c26 = arith.constant 26 : index
    %c0_75 = arith.constant 0 : index
    %103 = tpu.strided_load %arg9[%c26, %c0_75] {strides = array<i32: 32, 1>} : memref<61x8xf32, #tpu.memory_space<vmem>>, vector<2x8xf32>
    %104 = arith.truncf %103 : vector<2x8xf32> to vector<2x8xbf16>
    %c13 = arith.constant 13 : index
    %c0_76 = arith.constant 0 : index
    %c0_77 = arith.constant 0 : index
    %105 = vector.load %arg6[%c13, %c0_76, %c0_77] : memref<14x8x128xbf16, #tpu.memory_space<vmem>>, vector<1x8x128xbf16>
    %106 = vector.shape_cast %105 : vector<1x8x128xbf16> to vector<8x128xbf16>
    %cst_78 = arith.constant dense<0.000000e+00> : vector<2x128xf32>
    %107 = tpu.matmul %104, %106, %cst_78 {dimension_numbers = #tpu.dot_dimension_numbers<[1], [0], [0], [1], [0, 0, 1, 1], [], []>} : vector<2x8xbf16>, vector<8x128xbf16>, vector<2x128xf32> -> vector<2x128xf32>
    %108 = arith.addf %102, %107 : vector<2x128xf32>
    %c0_79 = arith.constant 0 : index
    %c0_80 = arith.constant 0 : index
    %109 = vector.load %arg7[%c0_79, %c0_80] : memref<1x128xf32, #tpu.memory_space<vmem>>, vector<1x128xf32>
    %110 = vector.broadcast %109 : vector<1x128xf32> to vector<2x128xf32>
    %111 = arith.addf %108, %110 : vector<2x128xf32>
    %cst_81 = arith.constant dense<0xFF800000> : vector<2xf32>
    %112 = vector.multi_reduction <maximumf>, %111, %cst_81 [1] : vector<2x128xf32> to vector<2xf32>
    %113 = vector.shape_cast %112 : vector<2xf32> to vector<2x1xf32>
    %114 = vector.broadcast %113 : vector<2x1xf32> to vector<2x128xf32>
    %115 = arith.subf %111, %114 : vector<2x128xf32>
    %116 = math.exp %115 : vector<2x128xf32>
    %cst_82 = arith.constant dense<0.000000e+00> : vector<2xf32>
    %117 = vector.multi_reduction <add>, %116, %cst_82 [1] : vector<2x128xf32> to vector<2xf32>
    %118 = vector.shape_cast %117 : vector<2xf32> to vector<2x1xf32>
    %119 = tpu.reciprocal %118 {approx = true} : vector<2x1xf32> -> vector<2x1xf32>
    %120 = vector.broadcast %119 : vector<2x1xf32> to vector<2x128xf32>
    %121 = arith.mulf %116, %120 : vector<2x128xf32>
    %c0_83 = arith.constant 0 : index
    %c0_84 = arith.constant 0 : index
    %122 = vector.load %arg8[%c0_83, %c0_84] : memref<2x128xf32, #tpu.memory_space<vmem>>, vector<2x128xf32>
    tpu.vector_store %arg8[%c0_83, %c0_84], %121 {strides = array<i32>} : memref<2x128xf32, #tpu.memory_space<vmem>>, vector<2x128xf32>,
    return
  }
  func.func @transform_0(%arg0: i32) -> (i32, i32) {
    %c0_i32 = arith.constant 0 : i32
    %c0_i32_0 = arith.constant 0 : i32
    return %arg0, %c0_i32 : i32, i32
  }
  func.func @transform_1(%arg0: i32) -> (i32, i32) {
    %c0_i32 = arith.constant 0 : i32
    %c0_i32_0 = arith.constant 0 : i32
    %c0_i32_1 = arith.constant 0 : i32
    return %c0_i32, %c0_i32_0 : i32, i32
  }
  func.func @transform_2(%arg0: i32) -> (i32, i32) {
    %c0_i32 = arith.constant 0 : i32
    %c0_i32_0 = arith.constant 0 : i32
    %c0_i32_1 = arith.constant 0 : i32
    return %c0_i32, %c0_i32_0 : i32, i32
  }
  func.func @transform_3(%arg0: i32) -> (i32, i32) {
    %c0_i32 = arith.constant 0 : i32
    %c0_i32_0 = arith.constant 0 : i32
    %c0_i32_1 = arith.constant 0 : i32
    return %c0_i32, %c0_i32_0 : i32, i32
  }
  func.func @transform_4(%arg0: i32) -> (i32, i32) {
    %c0_i32 = arith.constant 0 : i32
    %c0_i32_0 = arith.constant 0 : i32
    %c0_i32_1 = arith.constant 0 : i32
    return %c0_i32, %c0_i32_0 : i32, i32
  }
  func.func @transform_5(%arg0: i32) -> (i32, i32, i32) {
    %c0_i32 = arith.constant 0 : i32
    %c0_i32_0 = arith.constant 0 : i32
    %c0_i32_1 = arith.constant 0 : i32
    %c0_i32_2 = arith.constant 0 : i32
    return %c0_i32, %c0_i32_0, %c0_i32_1 : i32, i32, i32
  }
  func.func @transform_6(%arg0: i32) -> (i32, i32) {
    %c0_i32 = arith.constant 0 : i32
    %c0_i32_0 = arith.constant 0 : i32
    %c0_i32_1 = arith.constant 0 : i32
    return %c0_i32, %c0_i32_0 : i32, i32
  }
  func.func @transform_7(%arg0: i32) -> (i32, i32) {
    %c0_i32 = arith.constant 0 : i32
    %c0_i32_0 = arith.constant 0 : i32
    return %arg0, %c0_i32 : i32, i32
  }
}

</mosaic_0001>

<llo_original>
// kernel: tpu_custom_call.1
$region0: #{tpu_custom_call.1}
  #allocation0 [shape = 'u32[]', space=smem, size = 0x4, offset = 0x4, fixed_abs, tag = 'smem constant byte address 0x4 - core index']
  #allocation1 [shape = 'u32[144,128]{1,0:T(1,128)}', space=vmem, size = 0x12000, scoped, tag = 'internal scratch']
  #allocation2 [shape = 'f32[61,8]{1,0:T(8,128)}', space=vmem, size = 0x8000, scoped, tag = 'scratch operand']
  %s0 = inlined_call_operand.vmem [shape: bf16[64,12], index: 0, kind: input, shape index: {}]
  %s1 = inlined_call_operand.vmem [shape: bf16[12,8], index: 1, kind: input, shape index: {}]
  %s2 = inlined_call_operand.vmem [shape: f32[1,8], index: 2, kind: input, shape index: {}]
  %s3 = inlined_call_operand.vmem [shape: bf16[24,8], index: 3, kind: input, shape index: {}]
  %s4 = inlined_call_operand.vmem [shape: f32[1,8], index: 4, kind: input, shape index: {}]
  %s5 = inlined_call_operand.vmem [shape: bf16[14,8,128], index: 5, kind: input, shape index: {}]
  %s6 = inlined_call_operand.vmem [shape: f32[1,128], index: 6, kind: input, shape index: {}]
  %s7 = inlined_call_operand.hbm [shape: f32[2,128], index: 7, kind: output, shape index: {}]
  %s8 = sld [smem:[#allocation0]]
  $region38: #{tpu_custom_call.1} parent=0
    _
  %s10 = ssub.s32 1, %s8
  %s11 = scalar_select 0, %s10, %s8
  $region1: #{tpu_custom_call.1} parent=0
    #allocation3 [shape = 'u8[1024]{0}', space=vmem, size = 0x400, scoped, tag = 'output window, operand 0, single buffered']
    #allocation4 [shape = 's32[1]{0}', space=sflag, size = 0x4, scoped, tag = 'scoped memory for tpu_custom_call.1']
    %12 = vsyncpa [#allocation4], 0
    // Predicated region
    $region2: #{tpu_custom_call.1} parent=1 // pred_check
      _
    $region3: #{tpu_custom_call.1} parent=1 // pred_check_branch
      %14 = sbr.rel (0) target = $region5
    $region4: #{tpu_custom_call.1} parent=1 // pred_region
      _
    $region5: #{tpu_custom_call.1} parent=1 // pred_fallthru
      _
    // Predicated region
    $region6: #{tpu_custom_call.1} parent=1 // pred_check
      _
    $region7: #{tpu_custom_call.1} parent=1 // pred_check_branch
      %16 = sbr.rel (0) target = $region9
    $region8: #{tpu_custom_call.1} parent=1 // pred_region
      _
    $region9: #{tpu_custom_call.1} parent=1 // pred_fallthru
      _
    // Predicated region
    $region10: #{tpu_custom_call.1} parent=1 // pred_check
      _
    $region11: #{tpu_custom_call.1} parent=1 // pred_check_branch
      %18 = sbr.rel (0) target = $region13
    $region12: #{tpu_custom_call.1} parent=1 // pred_region
      _
    $region13: #{tpu_custom_call.1} parent=1 // pred_fallthru
      _
    // Predicated region
    $region14: #{tpu_custom_call.1} parent=1 // pred_check
      _
    $region15: #{tpu_custom_call.1} parent=1 // pred_check_branch
      %20 = sbr.rel (0) target = $region17
    $region16: #{tpu_custom_call.1} parent=1 // pred_region
      _
    $region17: #{tpu_custom_call.1} parent=1 // pred_fallthru
      _
    // Predicated region
    $region18: #{tpu_custom_call.1} parent=1 // pred_check
      _
    $region19: #{tpu_custom_call.1} parent=1 // pred_check_branch
      %22 = sbr.rel (0) target = $region21
    $region20: #{tpu_custom_call.1} parent=1 // pred_region
      _
    $region21: #{tpu_custom_call.1} parent=1 // pred_fallthru
      _
    // Predicated region
    $region22: #{tpu_custom_call.1} parent=1 // pred_check
      _
    $region23: #{tpu_custom_call.1} parent=1 // pred_check_branch
      %24 = sbr.rel (0) target = $region25
    $region24: #{tpu_custom_call.1} parent=1 // pred_region
      _
    $region25: #{tpu_custom_call.1} parent=1 // pred_fallthru
      _
    // Predicated region
    $region26: #{tpu_custom_call.1} parent=1 // pred_check
      _
    $region27: #{tpu_custom_call.1} parent=1 // pred_check_branch
      %26 = sbr.rel (0) target = $region29
    $region28: #{tpu_custom_call.1} parent=1 // pred_region
      _
    $region29: #{tpu_custom_call.1} parent=1 // pred_fallthru
      _
    %v28 = vld [vmem:[%s0] sm:$0xf]
    %v29 = vld [vmem:[%s0 + $0x4] sm:$0xf]
    %v30 = vld [vmem:[%s0 + $0x8] sm:$0xf]
    %v31 = vld [vmem:[%s0 + $0xc] sm:$0xf]
    %v32 = vld [vmem:[%s0 + $0x10] sm:$0xf]
    %v33 = vld [vmem:[%s0 + $0x14] sm:$0xf]
    %v34 = vld [vmem:[%s0 + $0x18] sm:$0xf]
    %v35 = vld [vmem:[%s0 + $0x1c] sm:$0xf]
    %v36 = vld [vmem:[%s1] sm:$0xf]
    %v37 = vld [vmem:[%s1 + $0x4] sm:$0x3]
    %v38 = vld [vmem:[%s2] sm:$0x1]
    %v40 = vlaneseq
    %v41 = vshrl.u32 %v40, 7
    %v42 = vsub.s32 0, %v41
    %v43 = vrot.slane %v38, %v42
    %v53 = vunpack.c.l.b16 %v28
    %v54 = vunpack.c.l.b16 %v29
    %v55 = vunpack.c.l.b16 %v30
    %v56 = vunpack.c.l.b16 %v31
    %v57 = vunpack.c.l.b16 %v32
    %v58 = vunpack.c.l.b16 %v33
    %v59 = vunpack.c.l.b16 %v34
    %v60 = vunpack.c.l.b16 %v35
    %v61 = vpack.c.b16 %v54, %v53
    %v62 = vpack.c.b16 %v56, %v55
    %v63 = vpack.c.b16 %v58, %v57
    %v64 = vpack.c.b16 %v60, %v59
    %v67 = vunpack.c.l.b16 %v36
    %v68 = vunpack.c.l.b16 %v37
    %v69 = vpack.c.b16 %v68, %v67
    %vm70 = vcmask 97280
    %v72 = vsel %vm70, %v61, 0
    %v75 = vsel %vm70, %v62, 0
    %v78 = vsel %vm70, %v63, 0
    %v81 = vsel %vm70, %v64, 0
    %vm83 = vcmask 1045504
    %v85 = vsel %vm83, %v69, 0
    %87 = vmatprep.subr.bf16.mxu0 0
    %88 = vmatpush1.bf16.msra.mxu0 %v85
    %89 = vmatprep.subr.bf16.mxu0 0
    %90 = vmatpush1.bf16.msra.mxu0 0
    %91 = vmatprep.subr.bf16.mxu0 0
    %92 = vmatpush1.bf16.msra.mxu0 0
    %93 = vmatprep.subr.bf16.mxu0 0
    %94 = vmatpush1.bf16.msra.mxu0 0
    %95 = vmatprep.subr.bf16.mxu0 0
    %96 = vmatpush1.bf16.msra.mxu0 0
    %97 = vmatprep.subr.bf16.mxu0 0
    %98 = vmatpush1.bf16.msra.mxu0 0
    %99 = vmatprep.subr.bf16.mxu0 0
    %100 = vmatpush1.bf16.msra.mxu0 0
    %101 = vmatprep.subr.bf16.mxu0 0
    %102 = vmatpush1.bf16.msra.mxu0 0
    %103 = vmatprep.subr.bf16.mxu0 0
    %104 = vmatpush1.bf16.msra.mxu0 0
    %105 = vmatprep.subr.bf16.mxu0 0
    %106 = vmatpush1.bf16.msra.mxu0 0
    %107 = vmatprep.subr.bf16.mxu0 0
    %108 = vmatpush1.bf16.msra.mxu0 0
    %109 = vmatprep.subr.bf16.mxu0 0
    %110 = vmatpush1.bf16.msra.mxu0 0
    %111 = vmatprep.subr.bf16.mxu0 0
    %112 = vmatpush1.bf16.msra.mxu0 0
    %113 = vmatprep.subr.bf16.mxu0 0
    %114 = vmatpush1.bf16.msra.mxu0 0
    %115 = vmatprep.subr.bf16.mxu0 0
    %116 = vmatpush1.bf16.msra.mxu0 0
    %117 = vmatprep.subr.bf16.mxu0 0
    %118 = vmatpush1.bf16.msra.mxu0 0
    %119 = vmatprep.mubr.bf16.mxu0 0
    %120 = vmatmul.mubr.bf16.gmra.mrb[0].mxu0 %v72
    %v121 = vpop.f32.mrb[0].mxu0
    %v122 = vadd.f32 %v43, %v121
    %v123 = vpop.f32.mrb[0].mxu0
    %v124 = vpop.f32.mrb[0].mxu0
    %v125 = vadd.f32 %v43, %v124
    %v126 = vpop.f32.mrb[0].mxu0
    %127 = vmatprep.mubr.bf16.mxu0 0
    %128 = vmatmul.mubr.bf16.gmra.mrb[0].mxu0 %v75
    %v129 = vpop.f32.mrb[0].mxu0
    %v130 = vadd.f32 %v43, %v129
    %v131 = vpop.f32.mrb[0].mxu0
    %v132 = vpop.f32.mrb[0].mxu0
    %v133 = vadd.f32 %v43, %v132
    %v134 = vpop.f32.mrb[0].mxu0
    %135 = vmatprep.mubr.bf16.mxu0 0
    %136 = vmatmul.mubr.bf16.gmra.mrb[0].mxu0 %v78
    %v137 = vpop.f32.mrb[0].mxu0
    %v138 = vadd.f32 %v43, %v137
    %v139 = vpop.f32.mrb[0].mxu0
    %v140 = vpop.f32.mrb[0].mxu0
    %v141 = vadd.f32 %v43, %v140
    %v142 = vpop.f32.mrb[0].mxu0
    %143 = vmatprep.mubr.bf16.mxu0 0
    %144 = vmatmul.mubr.bf16.gmra.mrb[0].mxu0 %v81
    %v145 = vpop.f32.mrb[0].mxu0
    %v146 = vadd.f32 %v43, %v145
    %v147 = vpop.f32.mrb[0].mxu0
    %v148 = vpop.f32.mrb[0].mxu0
    %v149 = vadd.f32 %v43, %v148
    %v150 = vpop.f32.mrb[0].mxu0
    %151 = vdwg.mxu0
    %v152 = vmax.f32 %v122, 0.0
    %v153 = vmax.f32 %v125, 0.0
    %v154 = vmax.f32 %v130, 0.0
    %v155 = vmax.f32 %v133, 0.0
    %v156 = vmax.f32 %v138, 0.0
    %v157 = vmax.f32 %v141, 0.0
    %v158 = vmax.f32 %v146, 0.0
    %v159 = vmax.f32 %v149, 0.0
    %vm168 = vcmask 1046528
    %v169 = vrot.slane %v152, 1
    %v170 = vrot.slane %v153, 1
    %v171 = vsel %vm168, %v169, %v170
    %v172 = vrot.slane %v154, 1
    %v173 = vsel %vm168, %v170, %v172
    %v174 = vrot.slane %v155, 1
    %v175 = vsel %vm168, %v172, %v174
    %v176 = vrot.slane %v156, 1
    %v177 = vsel %vm168, %v174, %v176
    %v178 = vrot.slane %v157, 1
    %v179 = vsel %vm168, %v176, %v178
    %v180 = vrot.slane %v158, 1
    %v181 = vsel %vm168, %v178, %v180
    %v182 = vrot.slane %v159, 1
    %v183 = vsel %vm168, %v180, %v182
    %184 = vrot.lane.b32.xlu0 %v171, 8
    %v185 = vpop.permute.xlu0 %184
    %186 = vrot.lane.b32.xlu0 %v173, 8
    %v187 = vpop.permute.xlu0 %186
    %188 = vrot.lane.b32.xlu0 %v175, 8
    %v189 = vpop.permute.xlu0 %188
    %190 = vrot.lane.b32.xlu0 %v177, 8
    %v191 = vpop.permute.xlu0 %190
    %192 = vrot.lane.b32.xlu0 %v179, 8
    %v193 = vpop.permute.xlu0 %192
    %194 = vrot.lane.b32.xlu0 %v181, 8
    %v195 = vpop.permute.xlu0 %194
    %196 = vrot.lane.b32.xlu0 %v183, 8
    %v197 = vpop.permute.xlu0 %196
    %198 = vrot.lane.b32.xlu0 %v182, 8
    %v199 = vpop.permute.xlu0 %198
    %v208 = vrot.slane %v152, 2
    %v209 = vrot.slane %v153, 2
    %v210 = vsel %vm83, %v208, %v209
    %v211 = vrot.slane %v154, 2
    %v212 = vsel %vm83, %v209, %v211
    %v213 = vrot.slane %v155, 2
    %v214 = vsel %vm83, %v211, %v213
    %v215 = vrot.slane %v156, 2
    %v216 = vsel %vm83, %v213, %v215
    %v217 = vrot.slane %v157, 2
    %v218 = vsel %vm83, %v215, %v217
    %v219 = vrot.slane %v158, 2
    %v220 = vsel %vm83, %v217, %v219
    %v221 = vrot.slane %v159, 2
    %v222 = vsel %vm83, %v219, %v221
    %223 = vrot.lane.b32.xlu0 %v210, 16
    %v224 = vpop.permute.xlu0 %223
    %225 = vrot.lane.b32.xlu0 %v212, 16
    %v226 = vpop.permute.xlu0 %225
    %227 = vrot.lane.b32.xlu0 %v214, 16
    %v228 = vpop.permute.xlu0 %227
    %229 = vrot.lane.b32.xlu0 %v216, 16
    %v230 = vpop.permute.xlu0 %229
    %231 = vrot.lane.b32.xlu0 %v218, 16
    %v232 = vpop.permute.xlu0 %231
    %233 = vrot.lane.b32.xlu0 %v220, 16
    %v234 = vpop.permute.xlu0 %233
    %235 = vrot.lane.b32.xlu0 %v222, 16
    %v236 = vpop.permute.xlu0 %235
    %237 = vrot.lane.b32.xlu0 %v221, 16
    %v238 = vpop.permute.xlu0 %237
    %vm247 = vcmask 64512
    %v248 = vsel %vm247, %v152, %v185
    %v249 = vsel %vm247, %v153, %v187
    %v250 = vsel %vm247, %v154, %v189
    %v251 = vsel %vm247, %v155, %v191
    %v252 = vsel %vm247, %v156, %v193
    %v253 = vsel %vm247, %v157, %v195
    %v254 = vsel %vm247, %v158, %v197
    %v255 = vsel %vm247, %v159, %v199
    %vm256 = vcmask 130048
    %v257 = vsel %vm256, %v248, %v224
    %v258 = vsel %vm256, %v249, %v226
    %v259 = vsel %vm256, %v250, %v228
    %v260 = vsel %vm256, %v251, %v230
    %v261 = vsel %vm256, %v252, %v232
    %v262 = vsel %vm256, %v253, %v234
    %v263 = vsel %vm256, %v254, %v236
    %v264 = vsel %vm256, %v255, %v238
    %v265 = vpack.c.bf16 %v258, %v257
    %v266 = vpack.c.bf16 %v260, %v259
    %v267 = vpack.c.bf16 %v262, %v261
    %v268 = vpack.c.bf16 %v264, %v263
    %v269 = vld [vmem:[%s3] sm:$0xf]
    %v270 = vld [vmem:[%s3 + $0x4] sm:$0xf]
    %v271 = vld [vmem:[%s3 + $0x8] sm:$0xf]
    %v272 = vld [vmem:[%s4] sm:$0x1]
    %v274 = vlaneseq
    %v275 = vshrl.u32 %v274, 7
    %v276 = vsub.s32 0, %v275
    %v277 = vrot.slane %v272, %v276
    %v282 = vunpack.c.l.b16 %v269
    %v283 = vunpack.c.l.b16 %v270
    %v284 = vunpack.c.l.b16 %v271
    %v285 = vpack.c.b16 %v283, %v282
    %v286 = vpack.c.b16 %v284, %v284
    %vm288 = vcmask 195584
    %v290 = vsel %vm288, %v265, 0
    %v293 = vsel %vm288, %v266, 0
    %v296 = vsel %vm288, %v267, 0
    %v299 = vsel %vm288, %v268, 0
    %vm301 = vcmask 1043456
    %v303 = vsel %vm301, %v286, 0
    %305 = vmatprep.subr.bf16.mxu0 0
    %306 = vmatpush1.bf16.msra.mxu0 %v285
    %307 = vmatprep.subr.bf16.mxu0 0
    %308 = vmatpush1.bf16.msra.mxu0 %v303
    %309 = vmatprep.subr.bf16.mxu0 0
    %310 = vmatpush1.bf16.msra.mxu0 0
    %311 = vmatprep.subr.bf16.mxu0 0
    %312 = vmatpush1.bf16.msra.mxu0 0
    %313 = vmatprep.subr.bf16.mxu0 0
    %314 = vmatpush1.bf16.msra.mxu0 0
    %315 = vmatprep.subr.bf16.mxu0 0
    %316 = vmatpush1.bf16.msra.mxu0 0
    %317 = vmatprep.subr.bf16.mxu0 0
    %318 = vmatpush1.bf16.msra.mxu0 0
    %319 = vmatprep.subr.bf16.mxu0 0
    %320 = vmatpush1.bf16.msra.mxu0 0
    %321 = vmatprep.subr.bf16.mxu0 0
    %322 = vmatpush1.bf16.msra.mxu0 0
    %323 = vmatprep.subr.bf16.mxu0 0
    %324 = vmatpush1.bf16.msra.mxu0 0
    %325 = vmatprep.subr.bf16.mxu0 0
    %326 = vmatpush1.bf16.msra.mxu0 0
    %327 = vmatprep.subr.bf16.mxu0 0
    %328 = vmatpush1.bf16.msra.mxu0 0
    %329 = vmatprep.subr.bf16.mxu0 0
    %330 = vmatpush1.bf16.msra.mxu0 0
    %331 = vmatprep.subr.bf16.mxu0 0
    %332 = vmatpush1.bf16.msra.mxu0 0
    %333 = vmatprep.subr.bf16.mxu0 0
    %334 = vmatpush1.bf16.msra.mxu0 0
    %335 = vmatprep.subr.bf16.mxu0 0
    %336 = vmatpush1.bf16.msra.mxu0 0
    %337 = vmatprep.mubr.bf16.mxu0 0
    %338 = vmatmul.mubr.bf16.gmra.mrb[0].mxu0 %v290
    %v339 = vpop.f32.mrb[0].mxu0
    %v340 = vadd.f32 %v277, %v339
    %v341 = vpop.f32.mrb[0].mxu0
    %v342 = vpop.f32.mrb[0].mxu0
    %v343 = vadd.f32 %v277, %v342
    %v344 = vpop.f32.mrb[0].mxu0
    %345 = vmatprep.mubr.bf16.mxu0 0
    %346 = vmatmul.mubr.bf16.gmra.mrb[0].mxu0 %v293
    %v347 = vpop.f32.mrb[0].mxu0
    %v348 = vadd.f32 %v277, %v347
    %v349 = vpop.f32.mrb[0].mxu0
    %v350 = vpop.f32.mrb[0].mxu0
    %v351 = vadd.f32 %v277, %v350
    %v352 = vpop.f32.mrb[0].mxu0
    %353 = vmatprep.mubr.bf16.mxu0 0
    %354 = vmatmul.mubr.bf16.gmra.mrb[0].mxu0 %v296
    %v355 = vpop.f32.mrb[0].mxu0
    %v356 = vadd.f32 %v277, %v355
    %v357 = vpop.f32.mrb[0].mxu0
    %v358 = vpop.f32.mrb[0].mxu0
    %v359 = vadd.f32 %v277, %v358
    %v360 = vpop.f32.mrb[0].mxu0
    %361 = vmatprep.mubr.bf16.mxu0 0
    %362 = vmatmul.mubr.bf16.gmra.mrb[0].mxu0 %v299
    %v363 = vpop.f32.mrb[0].mxu0
    %v364 = vadd.f32 %v277, %v363
    %v365 = vpop.f32.mrb[0].mxu0
    %v366 = vpop.f32.mrb[0].mxu0
    %v367 = vadd.f32 %v277, %v366
    %v368 = vpop.f32.mrb[0].mxu0
    %369 = vdwg.mxu0
    %v370 = vmax.f32 %v340, 0.0
    %v371 = vmax.f32 %v343, 0.0
    %v372 = vmax.f32 %v348, 0.0
    %v373 = vmax.f32 %v351, 0.0
    %v374 = vmax.f32 %v356, 0.0
    %v375 = vmax.f32 %v359, 0.0
    %v376 = vmax.f32 %v364, 0.0
    %v377 = vmax.f32 %v367, 0.0
    %v386 = vrot.slane %v370, 1
    %v387 = vrot.slane %v371, 1
    %v388 = vsel %vm168, %v386, %v387
    %v389 = vrot.slane %v372, 1
    %v390 = vsel %vm168, %v387, %v389
    %v391 = vrot.slane %v373, 1
    %v392 = vsel %vm168, %v389, %v391
    %v393 = vrot.slane %v374, 1
    %v394 = vsel %vm168, %v391, %v393
    %v395 = vrot.slane %v375, 1
    %v396 = vsel %vm168, %v393, %v395
    %v397 = vrot.slane %v376, 1
    %v398 = vsel %vm168, %v395, %v397
    %v399 = vrot.slane %v377, 1
    %v400 = vsel %vm168, %v397, %v399
    %v409 = vmax.f32 %v370, %v388
    %v410 = vmax.f32 %v371, %v390
    %v411 = vmax.f32 %v372, %v392
    %v412 = vmax.f32 %v373, %v394
    %v413 = vmax.f32 %v374, %v396
    %v414 = vmax.f32 %v375, %v398
    %v415 = vmax.f32 %v376, %v400
    %v416 = vmax.f32 %v377, %v399
    %417 = vst.msk [vmem:[#allocation2] sm:$0xff] %vm247, %v409
    %418 = vst.msk [vmem:[#allocation2 + $0x8] sm:$0xff] %vm247, %v410
    %419 = vst.msk [vmem:[#allocation2 + $0x10] sm:$0xff] %vm247, %v411
    %420 = vst.msk [vmem:[#allocation2 + $0x18] sm:$0xff] %vm247, %v412
    %421 = vst.msk [vmem:[#allocation2 + $0x20] sm:$0xff] %vm247, %v413
    %422 = vst.msk [vmem:[#allocation2 + $0x28] sm:$0xff] %vm247, %v414
    %423 = vst.msk [vmem:[#allocation2 + $0x30] sm:$0xff] %vm247, %v415
    %vm424 = vcmask 61440
    %425 = vst.msk [vmem:[#allocation2 + $0x38] sm:$0x1f] %vm424, %v416
    %v426 = vld [vmem:[#allocation2] ss:$32 sm:$0x1]
    %v427 = vld [vmem:[#allocation2] ss:$32 sm:$0x2]
    %v428 = vor.u32 %v426, %v427
    %v429 = vpack.c.bf16 %v428, %v428
    %v430 = vld [vmem:[%s5] sm:$0xf]
    %s431 = scalar_lea.vmem [#allocation2], 2
    %v432 = vld [vmem:[%s431] ss:$32 sm:$0x1]
    %v433 = vld [vmem:[%s431] ss:$32 sm:$0x2]
    %v434 = vor.u32 %v432, %v433
    %v435 = vpack.c.bf16 %v434, %v434
    %s436 = scalar_lea.vmem %s5, 4
    %v437 = vld [vmem:[%s436] sm:$0xf]
    %v439 = vsel %vm247, %v435, 0
    %v442 = vsel %vm301, %v437, 0
    %444 = vmatprep.subr.bf16.mxu0 0
    %445 = vmatpush1.bf16.msra.mxu0 %v442
    %446 = vmatprep.subr.bf16.mxu0 0
    %447 = vmatpush1.bf16.msra.mxu0 0
    %448 = vmatprep.subr.bf16.mxu0 0
    %449 = vmatpush1.bf16.msra.mxu0 0
    %450 = vmatprep.subr.bf16.mxu0 0
    %451 = vmatpush1.bf16.msra.mxu0 0
    %452 = vmatprep.subr.bf16.mxu0 0
    %453 = vmatpush1.bf16.msra.mxu0 0
    %454 = vmatprep.subr.bf16.mxu0 0
    %455 = vmatpush1.bf16.msra.mxu0 0
    %456 = vmatprep.subr.bf16.mxu0 0
    %457 = vmatpush1.bf16.msra.mxu0 0
    %458 = vmatprep.subr.bf16.mxu0 0
    %459 = vmatpush1.bf16.msra.mxu0 0
    %460 = vmatprep.subr.bf16.mxu0 0
    %461 = vmatpush1.bf16.msra.mxu0 0
    %462 = vmatprep.subr.bf16.mxu0 0
    %463 = vmatpush1.bf16.msra.mxu0 0
    %464 = vmatprep.subr.bf16.mxu0 0
    %465 = vmatpush1.bf16.msra.mxu0 0
    %466 = vmatprep.subr.bf16.mxu0 0
    %467 = vmatpush1.bf16.msra.mxu0 0
    %468 = vmatprep.subr.bf16.mxu0 0
    %469 = vmatpush1.bf16.msra.mxu0 0
    %470 = vmatprep.subr.bf16.mxu0 0
    %471 = vmatpush1.bf16.msra.mxu0 0
    %472 = vmatprep.subr.bf16.mxu0 0
    %473 = vmatpush1.bf16.msra.mxu0 0
    %474 = vmatprep.subr.bf16.mxu0 0
    %475 = vmatpush1.bf16.msra.mxu0 0
    %476 = vmatprep.mubr.bf16.mxu0 0
    %477 = vmatmul.mubr.bf16.gmra.mrb[0].mxu0 %v439
    %v478 = vpop.f32.mrb[0].mxu0
    %v479 = vadd.f32 0.0, %v478
    %v480 = vpop.f32.mrb[0].mxu0
    %v481 = vpop.f32.mrb[0].mxu0
    %v482 = vpop.f32.mrb[0].mxu0
    %483 = vdwg.mxu0
    %v485 = vsel %vm247, %v429, 0
    %v488 = vsel %vm301, %v430, 0
    %490 = vmatprep.subr.bf16.mxu0 0
    %491 = vmatpush1.bf16.msra.mxu0 %v488
    %492 = vmatprep.subr.bf16.mxu0 0
    %493 = vmatpush1.bf16.msra.mxu0 0
    %494 = vmatprep.subr.bf16.mxu0 0
    %495 = vmatpush1.bf16.msra.mxu0 0
    %496 = vmatprep.subr.bf16.mxu0 0
    %497 = vmatpush1.bf16.msra.mxu0 0
    %498 = vmatprep.subr.bf16.mxu0 0
    %499 = vmatpush1.bf16.msra.mxu0 0
    %500 = vmatprep.subr.bf16.mxu0 0
    %501 = vmatpush1.bf16.msra.mxu0 0
    %502 = vmatprep.subr.bf16.mxu0 0
    %503 = vmatpush1.bf16.msra.mxu0 0
    %504 = vmatprep.subr.bf16.mxu0 0
    %505 = vmatpush1.bf16.msra.mxu0 0
    %506 = vmatprep.subr.bf16.mxu0 0
    %507 = vmatpush1.bf16.msra.mxu0 0
    %508 = vmatprep.subr.bf16.mxu0 0
    %509 = vmatpush1.bf16.msra.mxu0 0
    %510 = vmatprep.subr.bf16.mxu0 0
    %511 = vmatpush1.bf16.msra.mxu0 0
    %512 = vmatprep.subr.bf16.mxu0 0
    %513 = vmatpush1.bf16.msra.mxu0 0
    %514 = vmatprep.subr.bf16.mxu0 0
    %515 = vmatpush1.bf16.msra.mxu0 0
    %516 = vmatprep.subr.bf16.mxu0 0
    %517 = vmatpush1.bf16.msra.mxu0 0
    %518 = vmatprep.subr.bf16.mxu0 0
    %519 = vmatpush1.bf16.msra.mxu0 0
    %520 = vmatprep.subr.bf16.mxu0 0
    %521 = vmatpush1.bf16.msra.mxu0 0
    %522 = vmatprep.mubr.bf16.mxu0 0
    %523 = vmatmul.mubr.bf16.gmra.mrb[0].mxu0 %v485
    %v524 = vpop.f32.mrb[0].mxu0
    %v525 = vadd.f32 %v479, %v524
    %v526 = vpop.f32.mrb[0].mxu0
    %v527 = vpop.f32.mrb[0].mxu0
    %v528 = vpop.f32.mrb[0].mxu0
    %529 = vdwg.mxu0
    %s530 = scalar_lea.vmem [#allocation2], 4
    %v531 = vld [vmem:[%s530] ss:$32 sm:$0x1]
    %v532 = vld [vmem:[%s530] ss:$32 sm:$0x2]
    %v533 = vor.u32 %v531, %v532
    %v534 = vpack.c.bf16 %v533, %v533
    %s535 = scalar_lea.vmem %s5, 8
    %v536 = vld [vmem:[%s535] sm:$0xf]
    %v538 = vsel %vm247, %v534, 0
    %v541 = vsel %vm301, %v536, 0
    %543 = vmatprep.subr.bf16.mxu0 0
    %544 = vmatpush1.bf16.msra.mxu0 %v541
    %545 = vmatprep.subr.bf16.mxu0 0
    %546 = vmatpush1.bf16.msra.mxu0 0
    %547 = vmatprep.subr.bf16.mxu0 0
    %548 = vmatpush1.bf16.msra.mxu0 0
    %549 = vmatprep.subr.bf16.mxu0 0
    %550 = vmatpush1.bf16.msra.mxu0 0
    %551 = vmatprep.subr.bf16.mxu0 0
    %552 = vmatpush1.bf16.msra.mxu0 0
    %553 = vmatprep.subr.bf16.mxu0 0
    %554 = vmatpush1.bf16.msra.mxu0 0
    %555 = vmatprep.subr.bf16.mxu0 0
    %556 = vmatpush1.bf16.msra.mxu0 0
    %557 = vmatprep.subr.bf16.mxu0 0
    %558 = vmatpush1.bf16.msra.mxu0 0
    %559 = vmatprep.subr.bf16.mxu0 0
    %560 = vmatpush1.bf16.msra.mxu0 0
    %561 = vmatprep.subr.bf16.mxu0 0
    %562 = vmatpush1.bf16.msra.mxu0 0
    %563 = vmatprep.subr.bf16.mxu0 0
    %564 = vmatpush1.bf16.msra.mxu0 0
    %565 = vmatprep.subr.bf16.mxu0 0
    %566 = vmatpush1.bf16.msra.mxu0 0
    %567 = vmatprep.subr.bf16.mxu0 0
    %568 = vmatpush1.bf16.msra.mxu0 0
    %569 = vmatprep.subr.bf16.mxu0 0
    %570 = vmatpush1.bf16.msra.mxu0 0
    %571 = vmatprep.subr.bf16.mxu0 0
    %572 = vmatpush1.bf16.msra.mxu0 0
    %573 = vmatprep.subr.bf16.mxu0 0
    %574 = vmatpush1.bf16.msra.mxu0 0
    %575 = vmatprep.mubr.bf16.mxu0 0
    %576 = vmatmul.mubr.bf16.gmra.mrb[0].mxu0 %v538
    %v577 = vpop.f32.mrb[0].mxu0
    %v578 = vadd.f32 0.0, %v577
    %v579 = vpop.f32.mrb[0].mxu0
    %v580 = vpop.f32.mrb[0].mxu0
    %v581 = vpop.f32.mrb[0].mxu0
    %582 = vdwg.mxu0
    %v583 = vadd.f32 %v525, %v578
    %s584 = scalar_lea.vmem [#allocation2], 6
    %v585 = vld [vmem:[%s584] ss:$32 sm:$0x1]
    %v586 = vld [vmem:[%s584] ss:$32 sm:$0x2]
    %v587 = vor.u32 %v585, %v586
    %v588 = vpack.c.bf16 %v587, %v587
    %s589 = scalar_lea.vmem %s5, 12
    %v590 = vld [vmem:[%s589] sm:$0xf]
    %v592 = vsel %vm247, %v588, 0
    %v595 = vsel %vm301, %v590, 0
    %597 = vmatprep.subr.bf16.mxu0 0
    %598 = vmatpush1.bf16.msra.mxu0 %v595
    %599 = vmatprep.subr.bf16.mxu0 0
    %600 = vmatpush1.bf16.msra.mxu0 0
    %601 = vmatprep.subr.bf16.mxu0 0
    %602 = vmatpush1.bf16.msra.mxu0 0
    %603 = vmatprep.subr.bf16.mxu0 0
    %604 = vmatpush1.bf16.msra.mxu0 0
    %605 = vmatprep.subr.bf16.mxu0 0
    %606 = vmatpush1.bf16.msra.mxu0 0
    %607 = vmatprep.subr.bf16.mxu0 0
    %608 = vmatpush1.bf16.msra.mxu0 0
    %609 = vmatprep.subr.bf16.mxu0 0
    %610 = vmatpush1.bf16.msra.mxu0 0
    %611 = vmatprep.subr.bf16.mxu0 0
    %612 = vmatpush1.bf16.msra.mxu0 0
    %613 = vmatprep.subr.bf16.mxu0 0
    %614 = vmatpush1.bf16.msra.mxu0 0
    %615 = vmatprep.subr.bf16.mxu0 0
    %616 = vmatpush1.bf16.msra.mxu0 0
    %617 = vmatprep.subr.bf16.mxu0 0
    %618 = vmatpush1.bf16.msra.mxu0 0
    %619 = vmatprep.subr.bf16.mxu0 0
    %620 = vmatpush1.bf16.msra.mxu0 0
    %621 = vmatprep.subr.bf16.mxu0 0
    %622 = vmatpush1.bf16.msra.mxu0 0
    %623 = vmatprep.subr.bf16.mxu0 0
    %624 = vmatpush1.bf16.msra.mxu0 0
    %625 = vmatprep.subr.bf16.mxu0 0
    %626 = vmatpush1.bf16.msra.mxu0 0
    %627 = vmatprep.subr.bf16.mxu0 0
    %628 = vmatpush1.bf16.msra.mxu0 0
    %629 = vmatprep.mubr.bf16.mxu0 0
    %630 = vmatmul.mubr.bf16.gmra.mrb[0].mxu0 %v592
    %v631 = vpop.f32.mrb[0].mxu0
    %v632 = vadd.f32 0.0, %v631
    %v633 = vpop.f32.mrb[0].mxu0
    %v634 = vpop.f32.mrb[0].mxu0
    %v635 = vpop.f32.mrb[0].mxu0
    %636 = vdwg.mxu0
    %v637 = vadd.f32 %v583, %v632
    %s638 = scalar_lea.vmem [#allocation2], 8
    %v639 = vld [vmem:[%s638] ss:$32 sm:$0x1]
    %v640 = vld [vmem:[%s638] ss:$32 sm:$0x2]
    %v641 = vor.u32 %v639, %v640
    %v642 = vpack.c.bf16 %v641, %v641
    %s643 = scalar_lea.vmem %s5, 16
    %v644 = vld [vmem:[%s643] sm:$0xf]
    %v646 = vsel %vm247, %v642, 0
    %v649 = vsel %vm301, %v644, 0
    %651 = vmatprep.subr.bf16.mxu0 0
    %652 = vmatpush1.bf16.msra.mxu0 %v649
    %653 = vmatprep.subr.bf16.mxu0 0
    %654 = vmatpush1.bf16.msra.mxu0 0
    %655 = vmatprep.subr.bf16.mxu0 0
    %656 = vmatpush1.bf16.msra.mxu0 0
    %657 = vmatprep.subr.bf16.mxu0 0
    %658 = vmatpush1.bf16.msra.mxu0 0
    %659 = vmatprep.subr.bf16.mxu0 0
    %660 = vmatpush1.bf16.msra.mxu0 0
    %661 = vmatprep.subr.bf16.mxu0 0
    %662 = vmatpush1.bf16.msra.mxu0 0
    %663 = vmatprep.subr.bf16.mxu0 0
    %664 = vmatpush1.bf16.msra.mxu0 0
    %665 = vmatprep.subr.bf16.mxu0 0
    %666 = vmatpush1.bf16.msra.mxu0 0
    %667 = vmatprep.subr.bf16.mxu0 0
    %668 = vmatpush1.bf16.msra.mxu0 0
    %669 = vmatprep.subr.bf16.mxu0 0
    %670 = vmatpush1.bf16.msra.mxu0 0
    %671 = vmatprep.subr.bf16.mxu0 0
    %672 = vmatpush1.bf16.msra.mxu0 0
    %673 = vmatprep.subr.bf16.mxu0 0
    %674 = vmatpush1.bf16.msra.mxu0 0
    %675 = vmatprep.subr.bf16.mxu0 0
    %676 = vmatpush1.bf16.msra.mxu0 0
    %677 = vmatprep.subr.bf16.mxu0 0
    %678 = vmatpush1.bf16.msra.mxu0 0
    %679 = vmatprep.subr.bf16.mxu0 0
    %680 = vmatpush1.bf16.msra.mxu0 0
    %681 = vmatprep.subr.bf16.mxu0 0
    %682 = vmatpush1.bf16.msra.mxu0 0
    %683 = vmatprep.mubr.bf16.mxu0 0
    %684 = vmatmul.mubr.bf16.gmra.mrb[0].mxu0 %v646
    %v685 = vpop.f32.mrb[0].mxu0
    %v686 = vadd.f32 0.0, %v685
    %v687 = vpop.f32.mrb[0].mxu0
    %v688 = vpop.f32.mrb[0].mxu0
    %v689 = vpop.f32.mrb[0].mxu0
    %690 = vdwg.mxu0
    %v691 = vadd.f32 %v637, %v686
    %s692 = scalar_lea.vmem [#allocation2], 10
    %v693 = vld [vmem:[%s692] ss:$32 sm:$0x1]
    %v694 = vld [vmem:[%s692] ss:$32 sm:$0x2]
    %v695 = vor.u32 %v693, %v694
    %v696 = vpack.c.bf16 %v695, %v695
    %s697 = scalar_lea.vmem %s5, 20
    %v698 = vld [vmem:[%s697] sm:$0xf]
    %v700 = vsel %vm247, %v696, 0
    %v703 = vsel %vm301, %v698, 0
    %705 = vmatprep.subr.bf16.mxu0 0
    %706 = vmatpush1.bf16.msra.mxu0 %v703
    %707 = vmatprep.subr.bf16.mxu0 0
    %708 = vmatpush1.bf16.msra.mxu0 0
    %709 = vmatprep.subr.bf16.mxu0 0
    %710 = vmatpush1.bf16.msra.mxu0 0
    %711 = vmatprep.subr.bf16.mxu0 0
    %712 = vmatpush1.bf16.msra.mxu0 0
    %713 = vmatprep.subr.bf16.mxu0 0
    %714 = vmatpush1.bf16.msra.mxu0 0
    %715 = vmatprep.subr.bf16.mxu0 0
    %716 = vmatpush1.bf16.msra.mxu0 0
    %717 = vmatprep.subr.bf16.mxu0 0
    %718 = vmatpush1.bf16.msra.mxu0 0
    %719 = vmatprep.subr.bf16.mxu0 0
    %720 = vmatpush1.bf16.msra.mxu0 0
    %721 = vmatprep.subr.bf16.mxu0 0
    %722 = vmatpush1.bf16.msra.mxu0 0
    %723 = vmatprep.subr.bf16.mxu0 0
    %724 = vmatpush1.bf16.msra.mxu0 0
    %725 = vmatprep.subr.bf16.mxu0 0
    %726 = vmatpush1.bf16.msra.mxu0 0
    %727 = vmatprep.subr.bf16.mxu0 0
    %728 = vmatpush1.bf16.msra.mxu0 0
    %729 = vmatprep.subr.bf16.mxu0 0
    %730 = vmatpush1.bf16.msra.mxu0 0
    %731 = vmatprep.subr.bf16.mxu0 0
    %732 = vmatpush1.bf16.msra.mxu0 0
    %733 = vmatprep.subr.bf16.mxu0 0
    %734 = vmatpush1.bf16.msra.mxu0 0
    %735 = vmatprep.subr.bf16.mxu0 0
    %736 = vmatpush1.bf16.msra.mxu0 0
    %737 = vmatprep.mubr.bf16.mxu0 0
    %738 = vmatmul.mubr.bf16.gmra.mrb[0].mxu0 %v700
    %v739 = vpop.f32.mrb[0].mxu0
    %v740 = vadd.f32 0.0, %v739
    %v741 = vpop.f32.mrb[0].mxu0
    %v742 = vpop.f32.mrb[0].mxu0
    %v743 = vpop.f32.mrb[0].mxu0
    %744 = vdwg.mxu0
    %v745 = vadd.f32 %v691, %v740
    %s746 = scalar_lea.vmem [#allocation2], 12
    %v747 = vld [vmem:[%s746] ss:$32 sm:$0x1]
    %v748 = vld [vmem:[%s746] ss:$32 sm:$0x2]
    %v749 = vor.u32 %v747, %v748
    %v750 = vpack.c.bf16 %v749, %v749
    %s751 = scalar_lea.vmem %s5, 24
    %v752 = vld [vmem:[%s751] sm:$0xf]
    %v754 = vsel %vm247, %v750, 0
    %v757 = vsel %vm301, %v752, 0
    %759 = vmatprep.subr.bf16.mxu0 0
    %760 = vmatpush1.bf16.msra.mxu0 %v757
    %761 = vmatprep.subr.bf16.mxu0 0
    %762 = vmatpush1.bf16.msra.mxu0 0
    %763 = vmatprep.subr.bf16.mxu0 0
    %764 = vmatpush1.bf16.msra.mxu0 0
    %765 = vmatprep.subr.bf16.mxu0 0
    %766 = vmatpush1.bf16.msra.mxu0 0
    %767 = vmatprep.subr.bf16.mxu0 0
    %768 = vmatpush1.bf16.msra.mxu0 0
    %769 = vmatprep.subr.bf16.mxu0 0
    %770 = vmatpush1.bf16.msra.mxu0 0
    %771 = vmatprep.subr.bf16.mxu0 0
    %772 = vmatpush1.bf16.msra.mxu0 0
    %773 = vmatprep.subr.bf16.mxu0 0
    %774 = vmatpush1.bf16.msra.mxu0 0
    %775 = vmatprep.subr.bf16.mxu0 0
    %776 = vmatpush1.bf16.msra.mxu0 0
    %777 = vmatprep.subr.bf16.mxu0 0
    %778 = vmatpush1.bf16.msra.mxu0 0
    %779 = vmatprep.subr.bf16.mxu0 0
    %780 = vmatpush1.bf16.msra.mxu0 0
    %781 = vmatprep.subr.bf16.mxu0 0
    %782 = vmatpush1.bf16.msra.mxu0 0
    %783 = vmatprep.subr.bf16.mxu0 0
    %784 = vmatpush1.bf16.msra.mxu0 0
    %785 = vmatprep.subr.bf16.mxu0 0
    %786 = vmatpush1.bf16.msra.mxu0 0
    %787 = vmatprep.subr.bf16.mxu0 0
    %788 = vmatpush1.bf16.msra.mxu0 0
    %789 = vmatprep.subr.bf16.mxu0 0
    %790 = vmatpush1.bf16.msra.mxu0 0
    %791 = vmatprep.mubr.bf16.mxu0 0
    %792 = vmatmul.mubr.bf16.gmra.mrb[0].mxu0 %v754
    %v793 = vpop.f32.mrb[0].mxu0
    %v794 = vadd.f32 0.0, %v793
    %v795 = vpop.f32.mrb[0].mxu0
    %v796 = vpop.f32.mrb[0].mxu0
    %v797 = vpop.f32.mrb[0].mxu0
    %798 = vdwg.mxu0
    %v799 = vadd.f32 %v745, %v794
    %s800 = scalar_lea.vmem [#allocation2], 14
    %v801 = vld [vmem:[%s800] ss:$32 sm:$0x1]
    %v802 = vld [vmem:[%s800] ss:$32 sm:$0x2]
    %v803 = vor.u32 %v801, %v802
    %v804 = vpack.c.bf16 %v803, %v803
    %s805 = scalar_lea.vmem %s5, 28
    %v806 = vld [vmem:[%s805] sm:$0xf]
    %v808 = vsel %vm247, %v804, 0
    %v811 = vsel %vm301, %v806, 0
    %813 = vmatprep.subr.bf16.mxu0 0
    %814 = vmatpush1.bf16.msra.mxu0 %v811
    %815 = vmatprep.subr.bf16.mxu0 0
    %816 = vmatpush1.bf16.msra.mxu0 0
    %817 = vmatprep.subr.bf16.mxu0 0
    %818 = vmatpush1.bf16.msra.mxu0 0
    %819 = vmatprep.subr.bf16.mxu0 0
    %820 = vmatpush1.bf16.msra.mxu0 0
    %821 = vmatprep.subr.bf16.mxu0 0
    %822 = vmatpush1.bf16.msra.mxu0 0
    %823 = vmatprep.subr.bf16.mxu0 0
    %824 = vmatpush1.bf16.msra.mxu0 0
    %825 = vmatprep.subr.bf16.mxu0 0
    %826 = vmatpush1.bf16.msra.mxu0 0
    %827 = vmatprep.subr.bf16.mxu0 0
    %828 = vmatpush1.bf16.msra.mxu0 0
    %829 = vmatprep.subr.bf16.mxu0 0
    %830 = vmatpush1.bf16.msra.mxu0 0
    %831 = vmatprep.subr.bf16.mxu0 0
    %832 = vmatpush1.bf16.msra.mxu0 0
    %833 = vmatprep.subr.bf16.mxu0 0
    %834 = vmatpush1.bf16.msra.mxu0 0
    %835 = vmatprep.subr.bf16.mxu0 0
    %836 = vmatpush1.bf16.msra.mxu0 0
    %837 = vmatprep.subr.bf16.mxu0 0
    %838 = vmatpush1.bf16.msra.mxu0 0
    %839 = vmatprep.subr.bf16.mxu0 0
    %840 = vmatpush1.bf16.msra.mxu0 0
    %841 = vmatprep.subr.bf16.mxu0 0
    %842 = vmatpush1.bf16.msra.mxu0 0
    %843 = vmatprep.subr.bf16.mxu0 0
    %844 = vmatpush1.bf16.msra.mxu0 0
    %845 = vmatprep.mubr.bf16.mxu0 0
    %846 = vmatmul.mubr.bf16.gmra.mrb[0].mxu0 %v808
    %v847 = vpop.f32.mrb[0].mxu0
    %v848 = vadd.f32 0.0, %v847
    %v849 = vpop.f32.mrb[0].mxu0
    %v850 = vpop.f32.mrb[0].mxu0
    %v851 = vpop.f32.mrb[0].mxu0
    %852 = vdwg.mxu0
    %v853 = vadd.f32 %v799, %v848
    %s854 = scalar_lea.vmem [#allocation2], 16
    %v855 = vld [vmem:[%s854] ss:$32 sm:$0x1]
    %v856 = vld [vmem:[%s854] ss:$32 sm:$0x2]
    %v857 = vor.u32 %v855, %v856
    %v858 = vpack.c.bf16 %v857, %v857
    %s859 = scalar_lea.vmem %s5, 32
    %v860 = vld [vmem:[%s859] sm:$0xf]
    %v862 = vsel %vm247, %v858, 0
    %v865 = vsel %vm301, %v860, 0
    %867 = vmatprep.subr.bf16.mxu0 0
    %868 = vmatpush1.bf16.msra.mxu0 %v865
    %869 = vmatprep.subr.bf16.mxu0 0
    %870 = vmatpush1.bf16.msra.mxu0 0
    %871 = vmatprep.subr.bf16.mxu0 0
    %872 = vmatpush1.bf16.msra.mxu0 0
    %873 = vmatprep.subr.bf16.mxu0 0
    %874 = vmatpush1.bf16.msra.mxu0 0
    %875 = vmatprep.subr.bf16.mxu0 0
    %876 = vmatpush1.bf16.msra.mxu0 0
    %877 = vmatprep.subr.bf16.mxu0 0
    %878 = vmatpush1.bf16.msra.mxu0 0
    %879 = vmatprep.subr.bf16.mxu0 0
    %880 = vmatpush1.bf16.msra.mxu0 0
    %881 = vmatprep.subr.bf16.mxu0 0
    %882 = vmatpush1.bf16.msra.mxu0 0
    %883 = vmatprep.subr.bf16.mxu0 0
    %884 = vmatpush1.bf16.msra.mxu0 0
    %885 = vmatprep.subr.bf16.mxu0 0
    %886 = vmatpush1.bf16.msra.mxu0 0
    %887 = vmatprep.subr.bf16.mxu0 0
    %888 = vmatpush1.bf16.msra.mxu0 0
    %889 = vmatprep.subr.bf16.mxu0 0
    %890 = vmatpush1.bf16.msra.mxu0 0
    %891 = vmatprep.subr.bf16.mxu0 0
    %892 = vmatpush1.bf16.msra.mxu0 0
    %893 = vmatprep.subr.bf16.mxu0 0
    %894 = vmatpush1.bf16.msra.mxu0 0
    %895 = vmatprep.subr.bf16.mxu0 0
    %896 = vmatpush1.bf16.msra.mxu0 0
    %897 = vmatprep.subr.bf16.mxu0 0
    %898 = vmatpush1.bf16.msra.mxu0 0
    %899 = vmatprep.mubr.bf16.mxu0 0
    %900 = vmatmul.mubr.bf16.gmra.mrb[0].mxu0 %v862
    %v901 = vpop.f32.mrb[0].mxu0
    %v902 = vadd.f32 0.0, %v901
    %v903 = vpop.f32.mrb[0].mxu0
    %v904 = vpop.f32.mrb[0].mxu0
    %v905 = vpop.f32.mrb[0].mxu0
    %906 = vdwg.mxu0
    %v907 = vadd.f32 %v853, %v902
    %s908 = scalar_lea.vmem [#allocation2], 18
    %v909 = vld [vmem:[%s908] ss:$32 sm:$0x1]
    %v910 = vld [vmem:[%s908] ss:$32 sm:$0x2]
    %v911 = vor.u32 %v909, %v910
    %v912 = vpack.c.bf16 %v911, %v911
    %s913 = scalar_lea.vmem %s5, 36
    %v914 = vld [vmem:[%s913] sm:$0xf]
    %v916 = vsel %vm247, %v912, 0
    %v919 = vsel %vm301, %v914, 0
    %921 = vmatprep.subr.bf16.mxu0 0
    %922 = vmatpush1.bf16.msra.mxu0 %v919
    %923 = vmatprep.subr.bf16.mxu0 0
    %924 = vmatpush1.bf16.msra.mxu0 0
    %925 = vmatprep.subr.bf16.mxu0 0
    %926 = vmatpush1.bf16.msra.mxu0 0
    %927 = vmatprep.subr.bf16.mxu0 0
    %928 = vmatpush1.bf16.msra.mxu0 0
    %929 = vmatprep.subr.bf16.mxu0 0
    %930 = vmatpush1.bf16.msra.mxu0 0
    %931 = vmatprep.subr.bf16.mxu0 0
    %932 = vmatpush1.bf16.msra.mxu0 0
    %933 = vmatprep.subr.bf16.mxu0 0
    %934 = vmatpush1.bf16.msra.mxu0 0
    %935 = vmatprep.subr.bf16.mxu0 0
    %936 = vmatpush1.bf16.msra.mxu0 0
    %937 = vmatprep.subr.bf16.mxu0 0
    %938 = vmatpush1.bf16.msra.mxu0 0
    %939 = vmatprep.subr.bf16.mxu0 0
    %940 = vmatpush1.bf16.msra.mxu0 0
    %941 = vmatprep.subr.bf16.mxu0 0
    %942 = vmatpush1.bf16.msra.mxu0 0
    %943 = vmatprep.subr.bf16.mxu0 0
    %944 = vmatpush1.bf16.msra.mxu0 0
    %945 = vmatprep.subr.bf16.mxu0 0
    %946 = vmatpush1.bf16.msra.mxu0 0
    %947 = vmatprep.subr.bf16.mxu0 0
    %948 = vmatpush1.bf16.msra.mxu0 0
    %949 = vmatprep.subr.bf16.mxu0 0
    %950 = vmatpush1.bf16.msra.mxu0 0
    %951 = vmatprep.subr.bf16.mxu0 0
    %952 = vmatpush1.bf16.msra.mxu0 0
    %953 = vmatprep.mubr.bf16.mxu0 0
    %954 = vmatmul.mubr.bf16.gmra.mrb[0].mxu0 %v916
    %v955 = vpop.f32.mrb[0].mxu0
    %v956 = vadd.f32 0.0, %v955
    %v957 = vpop.f32.mrb[0].mxu0
    %v958 = vpop.f32.mrb[0].mxu0
    %v959 = vpop.f32.mrb[0].mxu0
    %960 = vdwg.mxu0
    %v961 = vadd.f32 %v907, %v956
    %s962 = scalar_lea.vmem [#allocation2], 20
    %v963 = vld [vmem:[%s962] ss:$32 sm:$0x1]
    %v964 = vld [vmem:[%s962] ss:$32 sm:$0x2]
    %v965 = vor.u32 %v963, %v964
    %v966 = vpack.c.bf16 %v965, %v965
    %s967 = scalar_lea.vmem %s5, 40
    %v968 = vld [vmem:[%s967] sm:$0xf]
    %v970 = vsel %vm247, %v966, 0
    %v973 = vsel %vm301, %v968, 0
    %975 = vmatprep.subr.bf16.mxu0 0
    %976 = vmatpush1.bf16.msra.mxu0 %v973
    %977 = vmatprep.subr.bf16.mxu0 0
    %978 = vmatpush1.bf16.msra.mxu0 0
    %979 = vmatprep.subr.bf16.mxu0 0
    %980 = vmatpush1.bf16.msra.mxu0 0
    %981 = vmatprep.subr.bf16.mxu0 0
    %982 = vmatpush1.bf16.msra.mxu0 0
    %983 = vmatprep.subr.bf16.mxu0 0
    %984 = vmatpush1.bf16.msra.mxu0 0
    %985 = vmatprep.subr.bf16.mxu0 0
    %986 = vmatpush1.bf16.msra.mxu0 0
    %987 = vmatprep.subr.bf16.mxu0 0
    %988 = vmatpush1.bf16.msra.mxu0 0
    %989 = vmatprep.subr.bf16.mxu0 0
    %990 = vmatpush1.bf16.msra.mxu0 0
    %991 = vmatprep.subr.bf16.mxu0 0
    %992 = vmatpush1.bf16.msra.mxu0 0
    %993 = vmatprep.subr.bf16.mxu0 0
    %994 = vmatpush1.bf16.msra.mxu0 0
    %995 = vmatprep.subr.bf16.mxu0 0
    %996 = vmatpush1.bf16.msra.mxu0 0
    %997 = vmatprep.subr.bf16.mxu0 0
    %998 = vmatpush1.bf16.msra.mxu0 0
    %999 = vmatprep.subr.bf16.mxu0 0
    %1000 = vmatpush1.bf16.msra.mxu0 0
    %1001 = vmatprep.subr.bf16.mxu0 0
    %1002 = vmatpush1.bf16.msra.mxu0 0
    %1003 = vmatprep.subr.bf16.mxu0 0
    %1004 = vmatpush1.bf16.msra.mxu0 0
    %1005 = vmatprep.subr.bf16.mxu0 0
    %1006 = vmatpush1.bf16.msra.mxu0 0
    %1007 = vmatprep.mubr.bf16.mxu0 0
    %1008 = vmatmul.mubr.bf16.gmra.mrb[0].mxu0 %v970
    %v1009 = vpop.f32.mrb[0].mxu0
    %v1010 = vadd.f32 0.0, %v1009
    %v1011 = vpop.f32.mrb[0].mxu0
    %v1012 = vpop.f32.mrb[0].mxu0
    %v1013 = vpop.f32.mrb[0].mxu0
    %1014 = vdwg.mxu0
    %v1015 = vadd.f32 %v961, %v1010
    %s1016 = scalar_lea.vmem [#allocation2], 22
    %v1017 = vld [vmem:[%s1016] ss:$32 sm:$0x1]
    %v1018 = vld [vmem:[%s1016] ss:$32 sm:$0x2]
    %v1019 = vor.u32 %v1017, %v1018
    %v1020 = vpack.c.bf16 %v1019, %v1019
    %s1021 = scalar_lea.vmem %s5, 44
    %v1022 = vld [vmem:[%s1021] sm:$0xf]
    %v1024 = vsel %vm247, %v1020, 0
    %v1027 = vsel %vm301, %v1022, 0
    %1029 = vmatprep.subr.bf16.mxu0 0
    %1030 = vmatpush1.bf16.msra.mxu0 %v1027
    %1031 = vmatprep.subr.bf16.mxu0 0
    %1032 = vmatpush1.bf16.msra.mxu0 0
    %1033 = vmatprep.subr.bf16.mxu0 0
    %1034 = vmatpush1.bf16.msra.mxu0 0
    %1035 = vmatprep.subr.bf16.mxu0 0
    %1036 = vmatpush1.bf16.msra.mxu0 0
    %1037 = vmatprep.subr.bf16.mxu0 0
    %1038 = vmatpush1.bf16.msra.mxu0 0
    %1039 = vmatprep.subr.bf16.mxu0 0
    %1040 = vmatpush1.bf16.msra.mxu0 0
    %1041 = vmatprep.subr.bf16.mxu0 0
    %1042 = vmatpush1.bf16.msra.mxu0 0
    %1043 = vmatprep.subr.bf16.mxu0 0
    %1044 = vmatpush1.bf16.msra.mxu0 0
    %1045 = vmatprep.subr.bf16.mxu0 0
    %1046 = vmatpush1.bf16.msra.mxu0 0
    %1047 = vmatprep.subr.bf16.mxu0 0
    %1048 = vmatpush1.bf16.msra.mxu0 0
    %1049 = vmatprep.subr.bf16.mxu0 0
    %1050 = vmatpush1.bf16.msra.mxu0 0
    %1051 = vmatprep.subr.bf16.mxu0 0
    %1052 = vmatpush1.bf16.msra.mxu0 0
    %1053 = vmatprep.subr.bf16.mxu0 0
    %1054 = vmatpush1.bf16.msra.mxu0 0
    %1055 = vmatprep.subr.bf16.mxu0 0
    %1056 = vmatpush1.bf16.msra.mxu0 0
    %1057 = vmatprep.subr.bf16.mxu0 0
    %1058 = vmatpush1.bf16.msra.mxu0 0
    %1059 = vmatprep.subr.bf16.mxu0 0
    %1060 = vmatpush1.bf16.msra.mxu0 0
    %1061 = vmatprep.mubr.bf16.mxu0 0
    %1062 = vmatmul.mubr.bf16.gmra.mrb[0].mxu0 %v1024
    %v1063 = vpop.f32.mrb[0].mxu0
    %v1064 = vadd.f32 0.0, %v1063
    %v1065 = vpop.f32.mrb[0].mxu0
    %v1066 = vpop.f32.mrb[0].mxu0
    %v1067 = vpop.f32.mrb[0].mxu0
    %1068 = vdwg.mxu0
    %v1069 = vadd.f32 %v1015, %v1064
    %s1070 = scalar_lea.vmem [#allocation2], 24
    %v1071 = vld [vmem:[%s1070] ss:$32 sm:$0x1]
    %v1072 = vld [vmem:[%s1070] ss:$32 sm:$0x2]
    %v1073 = vor.u32 %v1071, %v1072
    %v1074 = vpack.c.bf16 %v1073, %v1073
    %s1075 = scalar_lea.vmem %s5, 48
    %v1076 = vld [vmem:[%s1075] sm:$0xf]
    %v1078 = vsel %vm247, %v1074, 0
    %v1081 = vsel %vm301, %v1076, 0
    %1083 = vmatprep.subr.bf16.mxu0 0
    %1084 = vmatpush1.bf16.msra.mxu0 %v1081
    %1085 = vmatprep.subr.bf16.mxu0 0
    %1086 = vmatpush1.bf16.msra.mxu0 0
    %1087 = vmatprep.subr.bf16.mxu0 0
    %1088 = vmatpush1.bf16.msra.mxu0 0
    %1089 = vmatprep.subr.bf16.mxu0 0
    %1090 = vmatpush1.bf16.msra.mxu0 0
    %1091 = vmatprep.subr.bf16.mxu0 0
    %1092 = vmatpush1.bf16.msra.mxu0 0
    %1093 = vmatprep.subr.bf16.mxu0 0
    %1094 = vmatpush1.bf16.msra.mxu0 0
    %1095 = vmatprep.subr.bf16.mxu0 0
    %1096 = vmatpush1.bf16.msra.mxu0 0
    %1097 = vmatprep.subr.bf16.mxu0 0
    %1098 = vmatpush1.bf16.msra.mxu0 0
    %1099 = vmatprep.subr.bf16.mxu0 0
    %1100 = vmatpush1.bf16.msra.mxu0 0
    %1101 = vmatprep.subr.bf16.mxu0 0
    %1102 = vmatpush1.bf16.msra.mxu0 0
    %1103 = vmatprep.subr.bf16.mxu0 0
    %1104 = vmatpush1.bf16.msra.mxu0 0
    %1105 = vmatprep.subr.bf16.mxu0 0
    %1106 = vmatpush1.bf16.msra.mxu0 0
    %1107 = vmatprep.subr.bf16.mxu0 0
    %1108 = vmatpush1.bf16.msra.mxu0 0
    %1109 = vmatprep.subr.bf16.mxu0 0
    %1110 = vmatpush1.bf16.msra.mxu0 0
    %1111 = vmatprep.subr.bf16.mxu0 0
    %1112 = vmatpush1.bf16.msra.mxu0 0
    %1113 = vmatprep.subr.bf16.mxu0 0
    %1114 = vmatpush1.bf16.msra.mxu0 0
    %1115 = vmatprep.mubr.bf16.mxu0 0
    %1116 = vmatmul.mubr.bf16.gmra.mrb[0].mxu0 %v1078
    %v1117 = vpop.f32.mrb[0].mxu0
    %v1118 = vadd.f32 0.0, %v1117
    %v1119 = vpop.f32.mrb[0].mxu0
    %v1120 = vpop.f32.mrb[0].mxu0
    %v1121 = vpop.f32.mrb[0].mxu0
    %1122 = vdwg.mxu0
    %v1123 = vadd.f32 %v1069, %v1118
    %s1124 = scalar_lea.vmem [#allocation2], 26
    %v1125 = vld [vmem:[%s1124] ss:$32 sm:$0x1]
    %v1126 = vld [vmem:[%s1124] ss:$32 sm:$0x2]
    %v1127 = vor.u32 %v1125, %v1126
    %v1128 = vpack.c.bf16 %v1127, %v1127
    %s1129 = scalar_lea.vmem %s5, 52
    %v1130 = vld [vmem:[%s1129] sm:$0xf]
    %v1132 = vsel %vm247, %v1128, 0
    %v1135 = vsel %vm301, %v1130, 0
    %1137 = vmatprep.subr.bf16.mxu0 0
    %1138 = vmatpush1.bf16.msra.mxu0 %v1135
    %1139 = vmatprep.subr.bf16.mxu0 0
    %1140 = vmatpush1.bf16.msra.mxu0 0
    %1141 = vmatprep.subr.bf16.mxu0 0
    %1142 = vmatpush1.bf16.msra.mxu0 0
    %1143 = vmatprep.subr.bf16.mxu0 0
    %1144 = vmatpush1.bf16.msra.mxu0 0
    %1145 = vmatprep.subr.bf16.mxu0 0
    %1146 = vmatpush1.bf16.msra.mxu0 0
    %1147 = vmatprep.subr.bf16.mxu0 0
    %1148 = vmatpush1.bf16.msra.mxu0 0
    %1149 = vmatprep.subr.bf16.mxu0 0
    %1150 = vmatpush1.bf16.msra.mxu0 0
    %1151 = vmatprep.subr.bf16.mxu0 0
    %1152 = vmatpush1.bf16.msra.mxu0 0
    %1153 = vmatprep.subr.bf16.mxu0 0
    %1154 = vmatpush1.bf16.msra.mxu0 0
    %1155 = vmatprep.subr.bf16.mxu0 0
    %1156 = vmatpush1.bf16.msra.mxu0 0
    %1157 = vmatprep.subr.bf16.mxu0 0
    %1158 = vmatpush1.bf16.msra.mxu0 0
    %1159 = vmatprep.subr.bf16.mxu0 0
    %1160 = vmatpush1.bf16.msra.mxu0 0
    %1161 = vmatprep.subr.bf16.mxu0 0
    %1162 = vmatpush1.bf16.msra.mxu0 0
    %1163 = vmatprep.subr.bf16.mxu0 0
    %1164 = vmatpush1.bf16.msra.mxu0 0
    %1165 = vmatprep.subr.bf16.mxu0 0
    %1166 = vmatpush1.bf16.msra.mxu0 0
    %1167 = vmatprep.subr.bf16.mxu0 0
    %1168 = vmatpush1.bf16.msra.mxu0 0
    %1169 = vmatprep.mubr.bf16.mxu0 0
    %1170 = vmatmul.mubr.bf16.gmra.mrb[0].mxu0 %v1132
    %v1171 = vpop.f32.mrb[0].mxu0
    %v1172 = vadd.f32 0.0, %v1171
    %v1173 = vpop.f32.mrb[0].mxu0
    %v1174 = vpop.f32.mrb[0].mxu0
    %v1175 = vpop.f32.mrb[0].mxu0
    %1176 = vdwg.mxu0
    %v1177 = vadd.f32 %v1123, %v1172
    %v1178 = vld [vmem:[%s6] sm:$0x1]
    %v1180 = vlaneseq
    %v1181 = vshrl.u32 %v1180, 7
    %v1182 = vsub.s32 0, %v1181
    %v1183 = vrot.slane %v1178, %v1182
    %v1185 = vadd.f32 %v1177, %v1183
    %vm1186 = vcmask 1041408
    %v1187 = vsel %vm1186, %v1185, -inf
    %1188 = vmax.xlane.f32.xlu0 %v1187
    %v1189 = vpop.xlane.xlu0 %1188
    %v1190 = vsub.f32 %v1185, %v1189
    %v1191 = vmul.f32 %v1190, 1.442695
    %v1192 = vpow.pop %v1191
    %v1193 = vsel %vm1186, %v1192, 0.0
    %1194 = vadd.xlane.f32.xlu0 %v1193
    %v1195 = vpop.xlane.xlu0 %1194
    %v1196 = vrcp.pop %v1195
    %v1197 = vmul.f32 %v1192, %v1196
    %1198 = vst [vmem:[#allocation3] sm:$0x3] %v1197
    // Predicated region
    $region30: #{tpu_custom_call.1} parent=1 // pred_check
      _
    $region31: #{tpu_custom_call.1} parent=1 // pred_check_branch
      %1200 = sbr.rel (0) target = $region33
    $region32: #{tpu_custom_call.1} parent=1 // pred_region
      %s1202 = ssub.s32 32, 32
      %1203 = vsyncadd [#allocation4], %s1202
      %s1205 = sshll.u32 [#allocation3], 4
      %s1206 = int_to_ptr.vmem [resolvable:$true] %s1205
      %1208 = dma.vmem_to_hbm [thread:$0]  %s1206, 32, %s7, [#allocation4]
    $region33: #{tpu_custom_call.1} parent=1 // pred_fallthru
      _
    // Predicated region
    $region34: #{tpu_custom_call.1} parent=1 // pred_check
      _
    $region35: #{tpu_custom_call.1} parent=1 // pred_check_branch
      %1210 = sbr.rel (0) target = $region37
    $region36: #{tpu_custom_call.1} parent=1 // pred_region
      %1211 = dma.done [#allocation4], 32
    $region37: #{tpu_custom_call.1} parent=1 // pred_fallthru
      _
    %1212 = vsyncpa [#allocation4], 1

</llo_original>
